<compile_context>
chip_gen: v7x
topology: tpu7x:2x2x1
jax: 0.10.0
libtpu: 0.0.40
codegen_flags: <defaults>
</compile_context>

<pallas_src>
import functools

import jax
import jax.numpy as jnp
from jax.experimental import pallas as pl
from jax.experimental.pallas import tpu as pltpu


# --------------------------------------------------------------------------
# Fused kernel: dense conv (shifted-slice matmuls) + relu + depthwise conv
# + residual + biases, all on one row tile.
#
#   x_ref:      (1, 1, Cin, XL)   zero-padded row-tile slab of x, spatial
#                                 flattened at width W (XL = RH*W + 2p)
#   wc_ref:     (K*K, Cout, Cin)  dense conv taps
#   bc_ref:     (Cout, 1)         dense conv bias
#   wd_ref:     (Kd*Kd, Cout, 1)  depthwise taps
#   bd_ref:     (Cout, 1)         depthwise bias
#   colpos_ref: (1, YH*W)         int32, value = flat_index % W
#   out_ref:    (1, Cout, TH*W)   output row tile (flattened spatial)
# --------------------------------------------------------------------------
def _fused_kernel(x_ref, wc_ref, bc_ref, wd_ref, bd_ref, colpos_ref, out_ref,
                  *, H, W, TH, K, Kd, p, pd, conv_relu, mxu_dtype):
    t = pl.program_id(1)
    YH = TH + 2 * pd          # rows of y needed (output rows + depthwise halo)
    LY = YH * W               # flattened extended-y length
    LO = TH * W               # flattened output length
    Cout = out_ref.shape[1]

    cast = (lambda a: a) if mxu_dtype is None else (lambda a: a.astype(mxu_dtype))

    xv = x_ref[0, 0]          # (Cin, XL)
    colpos = colpos_ref[...]  # (1, LY)

    # ---- dense conv: in-kernel im2col via K*K shifted-slice matmuls --------
    acc = jnp.zeros((Cout, LY), jnp.float32)
    for kw in range(K):
        part = jnp.zeros((Cout, LY), jnp.float32)
        for kh in range(K):
            s = kh * W + kw
            xs = xv[:, s:s + LY]                       # shifted (Cin, LY) view
            part = part + jnp.dot(cast(wc_ref[kh * K + kw]), cast(xs),
                                  preferred_element_type=jnp.float32)
        lo, hi = max(0, p - kw), min(W, W + p - kw)    # valid output columns
        if lo == 0 and hi == W:
            acc = acc + part
        else:
            acc = acc + jnp.where((colpos >= lo) & (colpos < hi), part, 0.0)
    y = acc + bc_ref[...].astype(jnp.float32)          # pre-relu y, f32

    # ---- z = relu(y), zeroed outside the image (depthwise zero padding) ----
    z = jnp.maximum(y, 0.0) if conv_relu else y
    jj = jax.lax.broadcasted_iota(jnp.int32, (1, LY), 1)
    lo_r = (pd - t * TH) * W
    hi_r = (H + pd - t * TH) * W
    z = jnp.where((jj >= lo_r) & (jj < hi_r), z, 0.0)
    if pd > 0:
        zpad = jnp.zeros((Cout, pd), jnp.float32)
        z = jnp.concatenate([zpad, z, zpad], axis=1)   # (Cout, LY + 2*pd)

    # ---- depthwise conv + residual + bias ----------------------------------
    colpos_o = colpos[:, pd * W:pd * W + LO]           # (1, LO)
    dw = jnp.zeros((Cout, LO), jnp.float32)
    for kw in range(Kd):
        part = jnp.zeros((Cout, LO), jnp.float32)
        for kh in range(Kd):
            s = kh * W + kw
            part = part + z[:, s:s + LO] * wd_ref[kh * Kd + kw].astype(jnp.float32)
        lo, hi = max(0, pd - kw), min(W, W + pd - kw)
        if lo == 0 and hi == W:
            dw = dw + part
        else:
            dw = dw + jnp.where((colpos_o >= lo) & (colpos_o < hi), part, 0.0)

    out = y[:, pd * W:pd * W + LO] + dw + bd_ref[...].astype(jnp.float32)
    out_ref[0] = out.astype(out_ref.dtype)


# --------------------------------------------------------------------------
# Tile selection: biggest row tile whose working set fits the VMEM budget.
# --------------------------------------------------------------------------
def _tile_bytes(th, W, Cin, Cout, K, Kd):
    p, pd = (K - 1) // 2, (Kd - 1) // 2
    yh = th + 2 * pd
    rh = th + 2 * (p + pd)
    xl = rh * W + 2 * p
    fb = 4
    io = 2 * fb * (Cin * xl + Cout * th * W)                    # double-buffered tiles
    wts = 2 * fb * (K * K * Cout * Cin + Kd * Kd * Cout + 2 * Cout + yh * W)
    tmp = fb * (6 * Cout * yh * W + 3 * Cout * th * W + 4 * Cin * xl)
    return io + wts + tmp


def _pick_row_tile(H, W, Cin, Cout, K, Kd, budget_bytes=40 << 20):
    # Largest tile dividing H with a lane-dense output (TH*W multiple of 128,
    # or the full image) whose estimated VMEM working set fits the budget.
    cands = sorted((th for th in range(1, H + 1)
                    if H % th == 0 and (th == H or (th * W) % 128 == 0)),
                   reverse=True)
    for th in cands:
        if _tile_bytes(th, W, Cin, Cout, K, Kd) <= budget_bytes:
            return th
    return cands[-1]


# --------------------------------------------------------------------------
# Wrapper: layout plumbing only (padding, row-tile slabs, weight reshapes).
# --------------------------------------------------------------------------
def depthwise_head_forward(x_nchw, params, conv_relu=True, row_tile=None,
                           mxu_dtype=None):
    conv_w = params["conv_w"]   # (Cout, Cin, K, K)   PyTorch OIHW
    conv_b = params["conv_b"]   # (Cout,)
    dw_w = params["dw_w"]       # (Cout, 1, Kd, Kd)   depthwise (groups=Cout)
    dw_b = params["dw_b"]       # (Cout,)

    Cout, Cin, K, _ = conv_w.shape
    Kd = dw_w.shape[-1]
    N, _, H, W = x_nchw.shape
    p, pd = (K - 1) // 2, (Kd - 1) // 2

    # TODO(synk): use_deform=True (ModulatedDeformConvPack) and
    #             depth_group != out_channels are not implemented.

    if row_tile is None:
        TH = _pick_row_tile(H, W, Cin, Cout, K, Kd)
    else:
        TH = row_tile
    if TH != H:
        assert H % TH == 0 and (TH * W) % 128 == 0, (TH, H, W)
    T = H // TH
    YH = TH + 2 * pd
    RH = TH + 2 * (p + pd)
    XL = RH * W + 2 * p

    # Row-tile slabs of x: channel-major, spatial flattened at width W, with
    # (p+pd) halo rows and p flat-padding columns.  Only the halo rows are
    # duplicated (2*(p+pd)/TH of x), not a 9x im2col tensor.
    xpad = jnp.pad(x_nchw, ((0, 0), (0, 0), (p + pd, p + pd), (0, 0)))
    if T == 1:
        xwin = xpad[:, None]
    else:
        xwin = jnp.stack([xpad[:, :, i * TH:i * TH + RH, :] for i in range(T)],
                         axis=1)                            # (N, T, Cin, RH, W)
    xflat = xwin.reshape(N, T, Cin, RH * W)
    xflat = jnp.pad(xflat, ((0, 0), (0, 0), (0, 0), (p, p)))  # (N, T, Cin, XL)

    wc = jnp.transpose(conv_w, (2, 3, 0, 1)).reshape(K * K, Cout, Cin)
    bc = conv_b.reshape(Cout, 1)
    wd = jnp.transpose(dw_w.reshape(Cout, Kd * Kd), (1, 0)).reshape(Kd * Kd, Cout, 1)
    bd = dw_b.reshape(Cout, 1)
    colpos = jnp.tile(jnp.arange(W, dtype=jnp.int32), YH).reshape(1, YH * W)

    # VMEM limit sized from the chosen tile; capped at 64 MiB (v7x physical).
    vmem_limit = int(min(64 << 20,
                         max(32 << 20, _tile_bytes(TH, W, Cin, Cout, K, Kd))))

    flops = int(2 * N * H * W * Cout * (Cin * K * K + Kd * Kd) + 4 * N * H * W * Cout)
    bytes_accessed = int(4 * (N * T * Cin * XL + N * Cout * H * W
                              + K * K * Cout * Cin + Kd * Kd * Cout
                              + 2 * Cout + YH * W))

    kernel = functools.partial(
        _fused_kernel, H=H, W=W, TH=TH, K=K, Kd=Kd, p=p, pd=pd,
        conv_relu=conv_relu, mxu_dtype=mxu_dtype)

    out_flat = pl.pallas_call(
        kernel,
        out_shape=jax.ShapeDtypeStruct((N, Cout, H * W), x_nchw.dtype),
        grid=(N, T),
        in_specs=[
            pl.BlockSpec((1, 1, Cin, XL), lambda n, t: (n, t, 0, 0)),
            pl.BlockSpec((K * K, Cout, Cin), lambda n, t: (0, 0, 0)),
            pl.BlockSpec((Cout, 1), lambda n, t: (0, 0)),
            pl.BlockSpec((Kd * Kd, Cout, 1), lambda n, t: (0, 0, 0)),
            pl.BlockSpec((Cout, 1), lambda n, t: (0, 0)),
            pl.BlockSpec((1, YH * W), lambda n, t: (0, 0)),
        ],
        out_specs=pl.BlockSpec((1, Cout, TH * W), lambda n, t: (n, 0, t)),
        compiler_params=pltpu.CompilerParams(
            dimension_semantics=("parallel", "parallel"),
            vmem_limit_bytes=vmem_limit),
        cost_estimate=pl.CostEstimate(flops=flops, transcendentals=0,
                                      bytes_accessed=bytes_accessed),
    )(xflat, wc, bc, wd, bd, colpos)

    # Free metadata reshape: (N, Cout, H*W) is already NCHW memory layout.
    return out_flat.reshape(N, Cout, H, W)


# --------------------------------------------------------------------------
# Pure-JAX reference (lax.conv) for correctness checking.
# --------------------------------------------------------------------------
def reference_forward(x_nchw, params, conv_relu=True):
    conv_w, conv_b = params["conv_w"], params["conv_b"]
    dw_w, dw_b = params["dw_w"], params["dw_b"]
    Cout = conv_w.shape[0]

    x = jnp.transpose(x_nchw, (0, 2, 3, 1))
    w_hwio = jnp.transpose(conv_w, (2, 3, 1, 0))
    y = jax.lax.conv_general_dilated(
        x, w_hwio, (1, 1), "SAME",
        dimension_numbers=("NHWC", "HWIO", "NHWC")) + conv_b
    z = jnp.maximum(y, 0.0) if conv_relu else y
    dw_hwio = jnp.transpose(dw_w, (2, 3, 1, 0))  # (Kd, Kd, 1, Cout)
    d = jax.lax.conv_general_dilated(
        z, dw_hwio, (1, 1), "SAME",
        dimension_numbers=("NHWC", "HWIO", "NHWC"),
        feature_group_count=Cout) + dw_b
    out = y + d
    return jnp.transpose(out, (0, 3, 1, 2))


if __name__ == "__main__":
    N, Cin, H, W = 2, 4, 16, 16
    Cout, K = 8, 3          # kernel_sizes = depth_kernel_sizes = 3

    key = jax.random.PRNGKey(0)
    k1, k2, k3, k4, k5 = jax.random.split(key, 5)

    params = {
        "conv_w": 0.1 * jax.random.normal(k1, (Cout, Cin, K, K), jnp.float32),
        "conv_b": 0.1 * jax.random.normal(k2, (Cout,), jnp.float32),
        "dw_w": 0.1 * jax.random.normal(k3, (Cout, 1, K, K), jnp.float32),
        "dw_b": 0.1 * jax.random.normal(k4, (Cout,), jnp.float32),
    }
    x = jax.random.normal(k5, (N, Cin, H, W), jnp.float32)

    for relu_flag in (True, False):
        ref = jax.block_until_ready(
            reference_forward(x, params, conv_relu=relu_flag))
        # Auto tile (whole image fits -> single tile) and explicit multi-tile
        # path (row_tile=8 -> grid (N, 2)) are both checked.
        for rt in (None, 8):
            out = jax.block_until_ready(
                depthwise_head_forward(x, params, conv_relu=relu_flag,
                                       row_tile=rt))
            assert out.shape == (N, Cout, H, W), out.shape
            err = float(jnp.max(jnp.abs(out - ref)))
            assert jnp.allclose(out, ref, atol=1e-4, rtol=1e-4), (relu_flag, rt, err)

    print("KERNEL_OK")
</pallas_src>

<mosaic_0001>
module attributes {stable_mosaic.version = 11 : i64} {
  func.func @_fused_kernel(%arg0: i32, %arg1: i32, %arg2: memref<1x1x4x322xf32, #tpu.memory_space<vmem>>, %arg3: memref<9x8x4xf32, #tpu.memory_space<vmem>>, %arg4: memref<8x1xf32, #tpu.memory_space<vmem>>, %arg5: memref<9x8x1xf32, #tpu.memory_space<vmem>>, %arg6: memref<8x1xf32, #tpu.memory_space<vmem>>, %arg7: memref<1x288xi32, #tpu.memory_space<vmem>>, %arg8: memref<1x8x256xf32, #tpu.memory_space<vmem>>) attributes {dimension_semantics = [#tpu.dimension_semantics<parallel>, #tpu.dimension_semantics<parallel>], iteration_bounds = array<i64: 2, 1>, scalar_prefetch = 0 : i64, scratch_operands = 0 : i64, tpu.core_type = #tpu.core_type<tc>, window_params = [{transform_indices = @transform_0, window_bounds = array<i64: 1, 1, 4, 322>}, {pipeline_mode = #tpu.pipeline_mode<synchronous>, transform_indices = @transform_1, window_bounds = array<i64: 9, 8, 4>}, {pipeline_mode = #tpu.pipeline_mode<synchronous>, transform_indices = @transform_2, window_bounds = array<i64: 8, 1>}, {pipeline_mode = #tpu.pipeline_mode<synchronous>, transform_indices = @transform_3, window_bounds = array<i64: 9, 8, 1>}, {pipeline_mode = #tpu.pipeline_mode<synchronous>, transform_indices = @transform_4, window_bounds = array<i64: 8, 1>}, {pipeline_mode = #tpu.pipeline_mode<synchronous>, transform_indices = @transform_5, window_bounds = array<i64: 1, 288>}, {transform_indices = @transform_6, window_bounds = array<i64: 1, 8, 256>}]} {
    %c0 = arith.constant 0 : index
    %c0_0 = arith.constant 0 : index
    %c0_1 = arith.constant 0 : index
    %c0_2 = arith.constant 0 : index
    %0 = vector.load %arg2[%c0, %c0_0, %c0_1, %c0_2] : memref<1x1x4x322xf32, #tpu.memory_space<vmem>>, vector<1x1x4x322xf32>
    %1 = vector.shape_cast %0 : vector<1x1x4x322xf32> to vector<4x322xf32>
    %c0_3 = arith.constant 0 : index
    %c0_4 = arith.constant 0 : index
    %2 = vector.load %arg7[%c0_3, %c0_4] : memref<1x288xi32, #tpu.memory_space<vmem>>, vector<1x288xi32>
    %cst = arith.constant 0.000000e+00 : f32
    %3 = vector.broadcast %cst : f32 to vector<8x288xf32>
    %cst_5 = arith.constant 0.000000e+00 : f32
    %4 = vector.broadcast %cst_5 : f32 to vector<8x288xf32>
    %5 = vector.extract_strided_slice %1 {offsets = [0, 0], sizes = [4, 288], strides = [1, 1]} : vector<4x322xf32> to vector<4x288xf32>
    %c0_6 = arith.constant 0 : index
    %c0_7 = arith.constant 0 : index
    %c0_8 = arith.constant 0 : index
    %6 = vector.load %arg3[%c0_6, %c0_7, %c0_8] : memref<9x8x4xf32, #tpu.memory_space<vmem>>, vector<1x8x4xf32>
    %7 = vector.shape_cast %6 : vector<1x8x4xf32> to vector<8x4xf32>
    %cst_9 = arith.constant dense<0.000000e+00> : vector<8x288xf32>
    %8 = tpu.matmul %7, %5, %cst_9 {dimension_numbers = #tpu.dot_dimension_numbers<[1], [0], [0], [1], [0, 0, 1, 1], [], []>} : vector<8x4xf32>, vector<4x288xf32>, vector<8x288xf32> -> vector<8x288xf32>
    %9 = arith.addf %4, %8 : vector<8x288xf32>
    %10 = vector.extract_strided_slice %1 {offsets = [0, 16], sizes = [4, 288], strides = [1, 1]} : vector<4x322xf32> to vector<4x288xf32>
    %c3 = arith.constant 3 : index
    %c0_10 = arith.constant 0 : index
    %c0_11 = arith.constant 0 : index
    %11 = vector.load %arg3[%c3, %c0_10, %c0_11] : memref<9x8x4xf32, #tpu.memory_space<vmem>>, vector<1x8x4xf32>
    %12 = vector.shape_cast %11 : vector<1x8x4xf32> to vector<8x4xf32>
    %cst_12 = arith.constant dense<0.000000e+00> : vector<8x288xf32>
    %13 = tpu.matmul %12, %10, %cst_12 {dimension_numbers = #tpu.dot_dimension_numbers<[1], [0], [0], [1], [0, 0, 1, 1], [], []>} : vector<8x4xf32>, vector<4x288xf32>, vector<8x288xf32> -> vector<8x288xf32>
    %14 = arith.addf %9, %13 : vector<8x288xf32>
    %15 = vector.extract_strided_slice %1 {offsets = [0, 32], sizes = [4, 288], strides = [1, 1]} : vector<4x322xf32> to vector<4x288xf32>
    %c6 = arith.constant 6 : index
    %c0_13 = arith.constant 0 : index
    %c0_14 = arith.constant 0 : index
    %16 = vector.load %arg3[%c6, %c0_13, %c0_14] : memref<9x8x4xf32, #tpu.memory_space<vmem>>, vector<1x8x4xf32>
    %17 = vector.shape_cast %16 : vector<1x8x4xf32> to vector<8x4xf32>
    %cst_15 = arith.constant dense<0.000000e+00> : vector<8x288xf32>
    %18 = tpu.matmul %17, %15, %cst_15 {dimension_numbers = #tpu.dot_dimension_numbers<[1], [0], [0], [1], [0, 0, 1, 1], [], []>} : vector<8x4xf32>, vector<4x288xf32>, vector<8x288xf32> -> vector<8x288xf32>
    %19 = arith.addf %14, %18 : vector<8x288xf32>
    %c1_i32 = arith.constant 1 : i32
    %20 = vector.broadcast %c1_i32 : i32 to vector<1x288xi32>
    %21 = arith.cmpi sge, %2, %20 : vector<1x288xi32>
    %c16_i32 = arith.constant 16 : i32
    %22 = vector.broadcast %c16_i32 : i32 to vector<1x288xi32>
    %23 = arith.cmpi slt, %2, %22 : vector<1x288xi32>
    %24 = arith.andi %21, %23 : vector<1x288xi1>
    %cst_16 = arith.constant 0.000000e+00 : f32
    %25 = vector.shape_cast %24 : vector<1x288xi1> to vector<1x288xi1>
    %26 = vector.broadcast %25 : vector<1x288xi1> to vector<8x288xi1>
    %27 = vector.broadcast %cst_16 : f32 to vector<8x288xf32>
    %28 = arith.select %26, %19, %27 : vector<8x288xi1>, vector<8x288xf32>
    %29 = arith.addf %3, %28 : vector<8x288xf32>
    %cst_17 = arith.constant 0.000000e+00 : f32
    %30 = vector.broadcast %cst_17 : f32 to vector<8x288xf32>
    %31 = vector.extract_strided_slice %1 {offsets = [0, 1], sizes = [4, 288], strides = [1, 1]} : vector<4x322xf32> to vector<4x288xf32>
    %c1 = arith.constant 1 : index
    %c0_18 = arith.constant 0 : index
    %c0_19 = arith.constant 0 : index
    %32 = vector.load %arg3[%c1, %c0_18, %c0_19] : memref<9x8x4xf32, #tpu.memory_space<vmem>>, vector<1x8x4xf32>
    %33 = vector.shape_cast %32 : vector<1x8x4xf32> to vector<8x4xf32>
    %cst_20 = arith.constant dense<0.000000e+00> : vector<8x288xf32>
    %34 = tpu.matmul %33, %31, %cst_20 {dimension_numbers = #tpu.dot_dimension_numbers<[1], [0], [0], [1], [0, 0, 1, 1], [], []>} : vector<8x4xf32>, vector<4x288xf32>, vector<8x288xf32> -> vector<8x288xf32>
    %35 = arith.addf %30, %34 : vector<8x288xf32>
    %36 = vector.extract_strided_slice %1 {offsets = [0, 17], sizes = [4, 288], strides = [1, 1]} : vector<4x322xf32> to vector<4x288xf32>
    %c4 = arith.constant 4 : index
    %c0_21 = arith.constant 0 : index
    %c0_22 = arith.constant 0 : index
    %37 = vector.load %arg3[%c4, %c0_21, %c0_22] : memref<9x8x4xf32, #tpu.memory_space<vmem>>, vector<1x8x4xf32>
    %38 = vector.shape_cast %37 : vector<1x8x4xf32> to vector<8x4xf32>
    %cst_23 = arith.constant dense<0.000000e+00> : vector<8x288xf32>
    %39 = tpu.matmul %38, %36, %cst_23 {dimension_numbers = #tpu.dot_dimension_numbers<[1], [0], [0], [1], [0, 0, 1, 1], [], []>} : vector<8x4xf32>, vector<4x288xf32>, vector<8x288xf32> -> vector<8x288xf32>
    %40 = arith.addf %35, %39 : vector<8x288xf32>
    %41 = vector.extract_strided_slice %1 {offsets = [0, 33], sizes = [4, 288], strides = [1, 1]} : vector<4x322xf32> to vector<4x288xf32>
    %c7 = arith.constant 7 : index
    %c0_24 = arith.constant 0 : index
    %c0_25 = arith.constant 0 : index
    %42 = vector.load %arg3[%c7, %c0_24, %c0_25] : memref<9x8x4xf32, #tpu.memory_space<vmem>>, vector<1x8x4xf32>
    %43 = vector.shape_cast %42 : vector<1x8x4xf32> to vector<8x4xf32>
    %cst_26 = arith.constant dense<0.000000e+00> : vector<8x288xf32>
    %44 = tpu.matmul %43, %41, %cst_26 {dimension_numbers = #tpu.dot_dimension_numbers<[1], [0], [0], [1], [0, 0, 1, 1], [], []>} : vector<8x4xf32>, vector<4x288xf32>, vector<8x288xf32> -> vector<8x288xf32>
    %45 = arith.addf %40, %44 : vector<8x288xf32>
    %46 = arith.addf %29, %45 : vector<8x288xf32>
    %cst_27 = arith.constant 0.000000e+00 : f32
    %47 = vector.broadcast %cst_27 : f32 to vector<8x288xf32>
    %48 = vector.extract_strided_slice %1 {offsets = [0, 2], sizes = [4, 288], strides = [1, 1]} : vector<4x322xf32> to vector<4x288xf32>
    %c2 = arith.constant 2 : index
    %c0_28 = arith.constant 0 : index
    %c0_29 = arith.constant 0 : index
    %49 = vector.load %arg3[%c2, %c0_28, %c0_29] : memref<9x8x4xf32, #tpu.memory_space<vmem>>, vector<1x8x4xf32>
    %50 = vector.shape_cast %49 : vector<1x8x4xf32> to vector<8x4xf32>
    %cst_30 = arith.constant dense<0.000000e+00> : vector<8x288xf32>
    %51 = tpu.matmul %50, %48, %cst_30 {dimension_numbers = #tpu.dot_dimension_numbers<[1], [0], [0], [1], [0, 0, 1, 1], [], []>} : vector<8x4xf32>, vector<4x288xf32>, vector<8x288xf32> -> vector<8x288xf32>
    %52 = arith.addf %47, %51 : vector<8x288xf32>
    %53 = vector.extract_strided_slice %1 {offsets = [0, 18], sizes = [4, 288], strides = [1, 1]} : vector<4x322xf32> to vector<4x288xf32>
    %c5 = arith.constant 5 : index
    %c0_31 = arith.constant 0 : index
    %c0_32 = arith.constant 0 : index
    %54 = vector.load %arg3[%c5, %c0_31, %c0_32] : memref<9x8x4xf32, #tpu.memory_space<vmem>>, vector<1x8x4xf32>
    %55 = vector.shape_cast %54 : vector<1x8x4xf32> to vector<8x4xf32>
    %cst_33 = arith.constant dense<0.000000e+00> : vector<8x288xf32>
    %56 = tpu.matmul %55, %53, %cst_33 {dimension_numbers = #tpu.dot_dimension_numbers<[1], [0], [0], [1], [0, 0, 1, 1], [], []>} : vector<8x4xf32>, vector<4x288xf32>, vector<8x288xf32> -> vector<8x288xf32>
    %57 = arith.addf %52, %56 : vector<8x288xf32>
    %58 = vector.extract_strided_slice %1 {offsets = [0, 34], sizes = [4, 288], strides = [1, 1]} : vector<4x322xf32> to vector<4x288xf32>
    %c8 = arith.constant 8 : index
    %c0_34 = arith.constant 0 : index
    %c0_35 = arith.constant 0 : index
    %59 = vector.load %arg3[%c8, %c0_34, %c0_35] : memref<9x8x4xf32, #tpu.memory_space<vmem>>, vector<1x8x4xf32>
    %60 = vector.shape_cast %59 : vector<1x8x4xf32> to vector<8x4xf32>
    %cst_36 = arith.constant dense<0.000000e+00> : vector<8x288xf32>
    %61 = tpu.matmul %60, %58, %cst_36 {dimension_numbers = #tpu.dot_dimension_numbers<[1], [0], [0], [1], [0, 0, 1, 1], [], []>} : vector<8x4xf32>, vector<4x288xf32>, vector<8x288xf32> -> vector<8x288xf32>
    %62 = arith.addf %57, %61 : vector<8x288xf32>
    %c0_i32 = arith.constant 0 : i32
    %63 = vector.broadcast %c0_i32 : i32 to vector<1x288xi32>
    %64 = arith.cmpi sge, %2, %63 : vector<1x288xi32>
    %c15_i32 = arith.constant 15 : i32
    %65 = vector.broadcast %c15_i32 : i32 to vector<1x288xi32>
    %66 = arith.cmpi slt, %2, %65 : vector<1x288xi32>
    %67 = arith.andi %64, %66 : vector<1x288xi1>
    %cst_37 = arith.constant 0.000000e+00 : f32
    %68 = vector.shape_cast %67 : vector<1x288xi1> to vector<1x288xi1>
    %69 = vector.broadcast %68 : vector<1x288xi1> to vector<8x288xi1>
    %70 = vector.broadcast %cst_37 : f32 to vector<8x288xf32>
    %71 = arith.select %69, %62, %70 : vector<8x288xi1>, vector<8x288xf32>
    %72 = arith.addf %46, %71 : vector<8x288xf32>
    %c0_38 = arith.constant 0 : index
    %c0_39 = arith.constant 0 : index
    %73 = vector.load %arg4[%c0_38, %c0_39] : memref<8x1xf32, #tpu.memory_space<vmem>>, vector<8x1xf32>
    %74 = vector.broadcast %73 : vector<8x1xf32> to vector<8x288xf32>
    %75 = arith.addf %72, %74 : vector<8x288xf32>
    %cst_40 = arith.constant 0.000000e+00 : f32
    %76 = vector.broadcast %cst_40 : f32 to vector<8x288xf32>
    %77 = arith.maximumf %75, %76 : vector<8x288xf32>
    %78 = tpu.iota {dimensions = array<i32: 1>} : vector<1x288xi32>
    %c16_i32_41 = arith.constant 16 : i32
    %79 = arith.muli %arg1, %c16_i32_41 : i32
    %c1_i32_42 = arith.constant 1 : i32
    %80 = arith.subi %c1_i32_42, %79 : i32
    %c16_i32_43 = arith.constant 16 : i32
    %81 = arith.muli %80, %c16_i32_43 : i32
    %c16_i32_44 = arith.constant 16 : i32
    %82 = arith.muli %arg1, %c16_i32_44 : i32
    %c17_i32 = arith.constant 17 : i32
    %83 = arith.subi %c17_i32, %82 : i32
    %c16_i32_45 = arith.constant 16 : i32
    %84 = arith.muli %83, %c16_i32_45 : i32
    %85 = vector.broadcast %81 : i32 to vector<1x288xi32>
    %86 = arith.cmpi sge, %78, %85 : vector<1x288xi32>
    %87 = vector.broadcast %84 : i32 to vector<1x288xi32>
    %88 = arith.cmpi slt, %78, %87 : vector<1x288xi32>
    %89 = arith.andi %86, %88 : vector<1x288xi1>
    %cst_46 = arith.constant 0.000000e+00 : f32
    %90 = vector.shape_cast %89 : vector<1x288xi1> to vector<1x288xi1>
    %91 = vector.broadcast %90 : vector<1x288xi1> to vector<8x288xi1>
    %92 = vector.broadcast %cst_46 : f32 to vector<8x288xf32>
    %93 = arith.select %91, %77, %92 : vector<8x288xi1>, vector<8x288xf32>
    %cst_47 = arith.constant 0.000000e+00 : f32
    %94 = vector.broadcast %cst_47 : f32 to vector<8x1xf32>
    %95 = tpu.concatenate %94, %93, %94 in 1 : vector<8x1xf32>, vector<8x288xf32>, vector<8x1xf32> -> vector<8x290xf32>
    %96 = vector.extract_strided_slice %2 {offsets = [0, 16], sizes = [1, 256], strides = [1, 1]} : vector<1x288xi32> to vector<1x256xi32>
    %cst_48 = arith.constant 0.000000e+00 : f32
    %97 = vector.broadcast %cst_48 : f32 to vector<8x256xf32>
    %cst_49 = arith.constant 0.000000e+00 : f32
    %98 = vector.broadcast %cst_49 : f32 to vector<8x256xf32>
    %99 = vector.extract_strided_slice %95 {offsets = [0, 0], sizes = [8, 256], strides = [1, 1]} : vector<8x290xf32> to vector<8x256xf32>
    %c0_50 = arith.constant 0 : index
    %c0_51 = arith.constant 0 : index
    %c0_52 = arith.constant 0 : index
    %100 = vector.load %arg5[%c0_50, %c0_51, %c0_52] : memref<9x8x1xf32, #tpu.memory_space<vmem>>, vector<1x8x1xf32>
    %101 = vector.shape_cast %100 : vector<1x8x1xf32> to vector<8x1xf32>
    %102 = vector.broadcast %101 : vector<8x1xf32> to vector<8x256xf32>
    %103 = arith.mulf %99, %102 : vector<8x256xf32>
    %104 = arith.addf %98, %103 : vector<8x256xf32>
    %105 = vector.extract_strided_slice %95 {offsets = [0, 16], sizes = [8, 256], strides = [1, 1]} : vector<8x290xf32> to vector<8x256xf32>
    %c3_53 = arith.constant 3 : index
    %c0_54 = arith.constant 0 : index
    %c0_55 = arith.constant 0 : index
    %106 = vector.load %arg5[%c3_53, %c0_54, %c0_55] : memref<9x8x1xf32, #tpu.memory_space<vmem>>, vector<1x8x1xf32>
    %107 = vector.shape_cast %106 : vector<1x8x1xf32> to vector<8x1xf32>
    %108 = vector.broadcast %107 : vector<8x1xf32> to vector<8x256xf32>
    %109 = arith.mulf %105, %108 : vector<8x256xf32>
    %110 = arith.addf %104, %109 : vector<8x256xf32>
    %111 = vector.extract_strided_slice %95 {offsets = [0, 32], sizes = [8, 256], strides = [1, 1]} : vector<8x290xf32> to vector<8x256xf32>
    %c6_56 = arith.constant 6 : index
    %c0_57 = arith.constant 0 : index
    %c0_58 = arith.constant 0 : index
    %112 = vector.load %arg5[%c6_56, %c0_57, %c0_58] : memref<9x8x1xf32, #tpu.memory_space<vmem>>, vector<1x8x1xf32>
    %113 = vector.shape_cast %112 : vector<1x8x1xf32> to vector<8x1xf32>
    %114 = vector.broadcast %113 : vector<8x1xf32> to vector<8x256xf32>
    %115 = arith.mulf %111, %114 : vector<8x256xf32>
    %116 = arith.addf %110, %115 : vector<8x256xf32>
    %c1_i32_59 = arith.constant 1 : i32
    %117 = vector.broadcast %c1_i32_59 : i32 to vector<1x256xi32>
    %118 = arith.cmpi sge, %96, %117 : vector<1x256xi32>
    %c16_i32_60 = arith.constant 16 : i32
    %119 = vector.broadcast %c16_i32_60 : i32 to vector<1x256xi32>
    %120 = arith.cmpi slt, %96, %119 : vector<1x256xi32>
    %121 = arith.andi %118, %120 : vector<1x256xi1>
    %cst_61 = arith.constant 0.000000e+00 : f32
    %122 = vector.shape_cast %121 : vector<1x256xi1> to vector<1x256xi1>
    %123 = vector.broadcast %122 : vector<1x256xi1> to vector<8x256xi1>
    %124 = vector.broadcast %cst_61 : f32 to vector<8x256xf32>
    %125 = arith.select %123, %116, %124 : vector<8x256xi1>, vector<8x256xf32>
    %126 = arith.addf %97, %125 : vector<8x256xf32>
    %cst_62 = arith.constant 0.000000e+00 : f32
    %127 = vector.broadcast %cst_62 : f32 to vector<8x256xf32>
    %128 = vector.extract_strided_slice %95 {offsets = [0, 1], sizes = [8, 256], strides = [1, 1]} : vector<8x290xf32> to vector<8x256xf32>
    %c1_63 = arith.constant 1 : index
    %c0_64 = arith.constant 0 : index
    %c0_65 = arith.constant 0 : index
    %129 = vector.load %arg5[%c1_63, %c0_64, %c0_65] : memref<9x8x1xf32, #tpu.memory_space<vmem>>, vector<1x8x1xf32>
    %130 = vector.shape_cast %129 : vector<1x8x1xf32> to vector<8x1xf32>
    %131 = vector.broadcast %130 : vector<8x1xf32> to vector<8x256xf32>
    %132 = arith.mulf %128, %131 : vector<8x256xf32>
    %133 = arith.addf %127, %132 : vector<8x256xf32>
    %134 = vector.extract_strided_slice %95 {offsets = [0, 17], sizes = [8, 256], strides = [1, 1]} : vector<8x290xf32> to vector<8x256xf32>
    %c4_66 = arith.constant 4 : index
    %c0_67 = arith.constant 0 : index
    %c0_68 = arith.constant 0 : index
    %135 = vector.load %arg5[%c4_66, %c0_67, %c0_68] : memref<9x8x1xf32, #tpu.memory_space<vmem>>, vector<1x8x1xf32>
    %136 = vector.shape_cast %135 : vector<1x8x1xf32> to vector<8x1xf32>
    %137 = vector.broadcast %136 : vector<8x1xf32> to vector<8x256xf32>
    %138 = arith.mulf %134, %137 : vector<8x256xf32>
    %139 = arith.addf %133, %138 : vector<8x256xf32>
    %140 = vector.extract_strided_slice %95 {offsets = [0, 33], sizes = [8, 256], strides = [1, 1]} : vector<8x290xf32> to vector<8x256xf32>
    %c7_69 = arith.constant 7 : index
    %c0_70 = arith.constant 0 : index
    %c0_71 = arith.constant 0 : index
    %141 = vector.load %arg5[%c7_69, %c0_70, %c0_71] : memref<9x8x1xf32, #tpu.memory_space<vmem>>, vector<1x8x1xf32>
    %142 = vector.shape_cast %141 : vector<1x8x1xf32> to vector<8x1xf32>
    %143 = vector.broadcast %142 : vector<8x1xf32> to vector<8x256xf32>
    %144 = arith.mulf %140, %143 : vector<8x256xf32>
    %145 = arith.addf %139, %144 : vector<8x256xf32>
    %146 = arith.addf %126, %145 : vector<8x256xf32>
    %cst_72 = arith.constant 0.000000e+00 : f32
    %147 = vector.broadcast %cst_72 : f32 to vector<8x256xf32>
    %148 = vector.extract_strided_slice %95 {offsets = [0, 2], sizes = [8, 256], strides = [1, 1]} : vector<8x290xf32> to vector<8x256xf32>
    %c2_73 = arith.constant 2 : index
    %c0_74 = arith.constant 0 : index
    %c0_75 = arith.constant 0 : index
    %149 = vector.load %arg5[%c2_73, %c0_74, %c0_75] : memref<9x8x1xf32, #tpu.memory_space<vmem>>, vector<1x8x1xf32>
    %150 = vector.shape_cast %149 : vector<1x8x1xf32> to vector<8x1xf32>
    %151 = vector.broadcast %150 : vector<8x1xf32> to vector<8x256xf32>
    %152 = arith.mulf %148, %151 : vector<8x256xf32>
    %153 = arith.addf %147, %152 : vector<8x256xf32>
    %154 = vector.extract_strided_slice %95 {offsets = [0, 18], sizes = [8, 256], strides = [1, 1]} : vector<8x290xf32> to vector<8x256xf32>
    %c5_76 = arith.constant 5 : index
    %c0_77 = arith.constant 0 : index
    %c0_78 = arith.constant 0 : index
    %155 = vector.load %arg5[%c5_76, %c0_77, %c0_78] : memref<9x8x1xf32, #tpu.memory_space<vmem>>, vector<1x8x1xf32>
    %156 = vector.shape_cast %155 : vector<1x8x1xf32> to vector<8x1xf32>
    %157 = vector.broadcast %156 : vector<8x1xf32> to vector<8x256xf32>
    %158 = arith.mulf %154, %157 : vector<8x256xf32>
    %159 = arith.addf %153, %158 : vector<8x256xf32>
    %160 = vector.extract_strided_slice %95 {offsets = [0, 34], sizes = [8, 256], strides = [1, 1]} : vector<8x290xf32> to vector<8x256xf32>
    %c8_79 = arith.constant 8 : index
    %c0_80 = arith.constant 0 : index
    %c0_81 = arith.constant 0 : index
    %161 = vector.load %arg5[%c8_79, %c0_80, %c0_81] : memref<9x8x1xf32, #tpu.memory_space<vmem>>, vector<1x8x1xf32>
    %162 = vector.shape_cast %161 : vector<1x8x1xf32> to vector<8x1xf32>
    %163 = vector.broadcast %162 : vector<8x1xf32> to vector<8x256xf32>
    %164 = arith.mulf %160, %163 : vector<8x256xf32>
    %165 = arith.addf %159, %164 : vector<8x256xf32>
    %c0_i32_82 = arith.constant 0 : i32
    %166 = vector.broadcast %c0_i32_82 : i32 to vector<1x256xi32>
    %167 = arith.cmpi sge, %96, %166 : vector<1x256xi32>
    %c15_i32_83 = arith.constant 15 : i32
    %168 = vector.broadcast %c15_i32_83 : i32 to vector<1x256xi32>
    %169 = arith.cmpi slt, %96, %168 : vector<1x256xi32>
    %170 = arith.andi %167, %169 : vector<1x256xi1>
    %cst_84 = arith.constant 0.000000e+00 : f32
    %171 = vector.shape_cast %170 : vector<1x256xi1> to vector<1x256xi1>
    %172 = vector.broadcast %171 : vector<1x256xi1> to vector<8x256xi1>
    %173 = vector.broadcast %cst_84 : f32 to vector<8x256xf32>
    %174 = arith.select %172, %165, %173 : vector<8x256xi1>, vector<8x256xf32>
    %175 = arith.addf %146, %174 : vector<8x256xf32>
    %176 = vector.extract_strided_slice %75 {offsets = [0, 16], sizes = [8, 256], strides = [1, 1]} : vector<8x288xf32> to vector<8x256xf32>
    %177 = arith.addf %176, %175 : vector<8x256xf32>
    %c0_85 = arith.constant 0 : index
    %c0_86 = arith.constant 0 : index
    %178 = vector.load %arg6[%c0_85, %c0_86] : memref<8x1xf32, #tpu.memory_space<vmem>>, vector<8x1xf32>
    %179 = vector.broadcast %178 : vector<8x1xf32> to vector<8x256xf32>
    %180 = arith.addf %177, %179 : vector<8x256xf32>
    %c0_87 = arith.constant 0 : index
    %c0_88 = arith.constant 0 : index
    %c0_89 = arith.constant 0 : index
    %181 = vector.load %arg8[%c0_87, %c0_88, %c0_89] : memref<1x8x256xf32, #tpu.memory_space<vmem>>, vector<1x8x256xf32>
    %182 = vector.shape_cast %181 : vector<1x8x256xf32> to vector<8x256xf32>
    %183 = vector.shape_cast %180 : vector<8x256xf32> to vector<1x8x256xf32>
    tpu.vector_store %arg8[%c0_87, %c0_88, %c0_89], %183 {strides = array<i32>} : memref<1x8x256xf32, #tpu.memory_space<vmem>>, vector<1x8x256xf32>,
    return
  }
  func.func @transform_0(%arg0: i32, %arg1: i32) -> (i32, i32, i32, i32) {
    %c0_i32 = arith.constant 0 : i32
    %c0_i32_0 = arith.constant 0 : i32
    %c0_i32_1 = arith.constant 0 : i32
    return %arg0, %arg1, %c0_i32, %c0_i32_0 : i32, i32, i32, i32
  }
  func.func @transform_1(%arg0: i32, %arg1: i32) -> (i32, i32, i32) {
    %c0_i32 = arith.constant 0 : i32
    %c0_i32_0 = arith.constant 0 : i32
    %c0_i32_1 = arith.constant 0 : i32
    %c0_i32_2 = arith.constant 0 : i32
    return %c0_i32, %c0_i32_0, %c0_i32_1 : i32, i32, i32
  }
  func.func @transform_2(%arg0: i32, %arg1: i32) -> (i32, i32) {
    %c0_i32 = arith.constant 0 : i32
    %c0_i32_0 = arith.constant 0 : i32
    %c0_i32_1 = arith.constant 0 : i32
    return %c0_i32, %c0_i32_0 : i32, i32
  }
  func.func @transform_3(%arg0: i32, %arg1: i32) -> (i32, i32, i32) {
    %c0_i32 = arith.constant 0 : i32
    %c0_i32_0 = arith.constant 0 : i32
    %c0_i32_1 = arith.constant 0 : i32
    %c0_i32_2 = arith.constant 0 : i32
    return %c0_i32, %c0_i32_0, %c0_i32_1 : i32, i32, i32
  }
  func.func @transform_4(%arg0: i32, %arg1: i32) -> (i32, i32) {
    %c0_i32 = arith.constant 0 : i32
    %c0_i32_0 = arith.constant 0 : i32
    %c0_i32_1 = arith.constant 0 : i32
    return %c0_i32, %c0_i32_0 : i32, i32
  }
  func.func @transform_5(%arg0: i32, %arg1: i32) -> (i32, i32) {
    %c0_i32 = arith.constant 0 : i32
    %c0_i32_0 = arith.constant 0 : i32
    %c0_i32_1 = arith.constant 0 : i32
    return %c0_i32, %c0_i32_0 : i32, i32
  }
  func.func @transform_6(%arg0: i32, %arg1: i32) -> (i32, i32, i32) {
    %c0_i32 = arith.constant 0 : i32
    %c0_i32_0 = arith.constant 0 : i32
    return %arg0, %c0_i32, %arg1 : i32, i32, i32
  }
}

</mosaic_0001>

<llo_original>
// kernel: tpu_custom_call.1
$region0: #{tpu_custom_call.1}
  #allocation0 [shape = 'u32[]', space=smem, size = 0x4, offset = 0x4, fixed_abs, tag = 'smem constant byte address 0x4 - core index']
  #allocation1 [shape = 'u32[144,128]{1,0:T(1,128)}', space=vmem, size = 0x12000, scoped, tag = 'internal scratch']
  %s0 = inlined_call_operand.vmem [shape: f32[2,1,4,322], index: 0, kind: input, shape index: {}]
  %s1 = inlined_call_operand.vmem [shape: f32[9,8,4], index: 1, kind: input, shape index: {}]
  %s2 = inlined_call_operand.vmem [shape: f32[8,1], index: 2, kind: input, shape index: {}]
  %s3 = inlined_call_operand.vmem [shape: f32[9,8,1], index: 3, kind: input, shape index: {}]
  %s4 = inlined_call_operand.vmem [shape: f32[8,1], index: 4, kind: input, shape index: {}]
  %s5 = inlined_call_operand.vmem [shape: s32[1,288], index: 5, kind: input, shape index: {}]
  %s6 = inlined_call_operand.hbm [shape: f32[2,8,256], index: 6, kind: output, shape index: {}]
  %s7 = sld [smem:[#allocation0]]
  $region57: #{tpu_custom_call.1} parent=0
    _
  %s9 = ssub.s32 1, %s7
  %s10 = scalar_select 0, %s9, %s7
  $region1: #{tpu_custom_call.1} parent=0
    #allocation2 [shape = 'u8[16384]{0}', space=vmem, size = 0x4000, scoped, tag = 'output window, operand 0']
    #allocation3 [shape = 's32[2]{0}', space=sflag, size = 0x8, scoped, tag = 'scoped memory for tpu_custom_call.1']
    %11 = vsyncpa [#allocation3], 0
    %s12 = scalar_lea.sflag [#allocation3], 1
    %13 = vsyncpa %s12, 0
    loop: start=0, step=1, limit=4
    $region2: #{tpu_custom_call.1} parent=1 // loop_pre_header
      _
    $region3: #{tpu_custom_call.1} parent=1 // loop_header
      %s15 = sphi 0, %s19
      %p16 = scmp.ge.s32.totalorder %s15, 4
      %s22 = sphi 0, %s34
      %s23 = sphi 0, %s30
      %s24 = sphi 0, %s22
      %s25 = sphi 0, %s23
      %s26 = sphi 0, %s24
      %s27 = sphi 0, %s25
      %s39 = sphi 0, %s41
      %s42 = sphi 0, %s39
      %s43 = sphi 0, %s42
      %s59 = sphi 0, %s43
      %s63 = sphi 0, %s63
      %s65 = sphi 0, %s63
      %s66 = sphi 0, %s65
      %s80 = sphi 0, %s66
      %s84 = sphi 0, %s84
      %s86 = sphi 0, %s84
      %s87 = sphi 0, %s86
      %s101 = sphi 0, %s87
      %s105 = sphi 0, %s105
      %s107 = sphi 0, %s105
      %s108 = sphi 0, %s107
      %s122 = sphi 0, %s108
      %s126 = sphi 0, %s126
      %s128 = sphi 0, %s126
      %s129 = sphi 0, %s128
      %s143 = sphi 0, %s129
      %s147 = sphi 0, %s147
      %s149 = sphi 0, %s147
      %s150 = sphi 0, %s149
      %s164 = sphi 0, %s150
      %s172 = sphi 0, %s174
      %s175 = sphi 0, %s172
      %s176 = sphi 0, %s175
      %s192 = sphi 0, %s176
    $region4: #{tpu_custom_call.1} parent=1 // loop_header_branch
      %18 = sbr.rel (%p16) target = $region8
    $region5: #{tpu_custom_call.1} parent=1 // loop_body
      %s20 = ssub.s32 %s15, 1
      %s21 = ssub.s32 %s15, 2
      %s28 = sadd.s32 1, %s23
      %p29 = scmp.ge.s32.totalorder %s28, 1
      %s30 = scalar_select %p29, 0, %s28
      %s31 = sadd.s32 1, %s22
      %s32 = scalar_select %p29, %s31, %s22
      %p33 = scmp.ge.s32.totalorder %s32, 2
      %s34 = scalar_select %p33, 0, %s32
      %s35 = ssub.s32 %s22, %s34
      %s36 = ssub.s32 %s23, %s30
      %s37 = sor.u32 %s35, %s36
      %p38 = scmp.eq.s32.totalorder %s37, 0
      %s40 = sadd.s32 %s39, 1
      %s41 = scalar_select %p38, %s39, %s40
      %p44 = pneg %p38
      %p45 = scmp.eq.s32.totalorder %s15, 1
      %p46 = por %p44, %p45
      %p47 = scmp.ne.s32.totalorder %s39, %s42
      %p48 = scmp.eq.s32.totalorder %s15, 0
      %p49 = por %p47, %p48
      %p50 = scmp.ne.s32.totalorder %s39, %s42
      %p51 = scmp.eq.s32.totalorder %s20, 1
      %p52 = por %p50, %p51
      %p53 = scmp.ne.s32.totalorder %s42, %s43
      %p54 = scmp.eq.s32.totalorder %s20, 0
      %p55 = por %p53, %p54
      %p56 = scmp.ne.s32.totalorder %s42, %s43
      %p57 = scmp.eq.s32.totalorder %s21, 1
      %p58 = por %p56, %p57
      %p60 = scmp.ne.s32.totalorder %s43, %s59
      %p61 = scmp.eq.s32.totalorder %s21, 0
      %p62 = por %p60, %p61
      %s64 = sadd.s32 %s63, 1
      %p67 = scmp.eq.s32.totalorder %s15, 1
      %p68 = scmp.ne.s32.totalorder %s63, %s65
      %p69 = scmp.eq.s32.totalorder %s15, 0
      %p70 = por %p68, %p69
      %p71 = scmp.ne.s32.totalorder %s63, %s65
      %p72 = scmp.eq.s32.totalorder %s20, 1
      %p73 = por %p71, %p72
      %p74 = scmp.ne.s32.totalorder %s65, %s66
      %p75 = scmp.eq.s32.totalorder %s20, 0
      %p76 = por %p74, %p75
      %p77 = scmp.ne.s32.totalorder %s65, %s66
      %p78 = scmp.eq.s32.totalorder %s21, 1
      %p79 = por %p77, %p78
      %p81 = scmp.ne.s32.totalorder %s66, %s80
      %p82 = scmp.eq.s32.totalorder %s21, 0
      %p83 = por %p81, %p82
      %s85 = sadd.s32 %s84, 1
      %p88 = scmp.eq.s32.totalorder %s15, 1
      %p89 = scmp.ne.s32.totalorder %s84, %s86
      %p90 = scmp.eq.s32.totalorder %s15, 0
      %p91 = por %p89, %p90
      %p92 = scmp.ne.s32.totalorder %s84, %s86
      %p93 = scmp.eq.s32.totalorder %s20, 1
      %p94 = por %p92, %p93
      %p95 = scmp.ne.s32.totalorder %s86, %s87
      %p96 = scmp.eq.s32.totalorder %s20, 0
      %p97 = por %p95, %p96
      %p98 = scmp.ne.s32.totalorder %s86, %s87
      %p99 = scmp.eq.s32.totalorder %s21, 1
      %p100 = por %p98, %p99
      %p102 = scmp.ne.s32.totalorder %s87, %s101
      %p103 = scmp.eq.s32.totalorder %s21, 0
      %p104 = por %p102, %p103
      %s106 = sadd.s32 %s105, 1
      %p109 = scmp.eq.s32.totalorder %s15, 1
      %p110 = scmp.ne.s32.totalorder %s105, %s107
      %p111 = scmp.eq.s32.totalorder %s15, 0
      %p112 = por %p110, %p111
      %p113 = scmp.ne.s32.totalorder %s105, %s107
      %p114 = scmp.eq.s32.totalorder %s20, 1
      %p115 = por %p113, %p114
      %p116 = scmp.ne.s32.totalorder %s107, %s108
      %p117 = scmp.eq.s32.totalorder %s20, 0
      %p118 = por %p116, %p117
      %p119 = scmp.ne.s32.totalorder %s107, %s108
      %p120 = scmp.eq.s32.totalorder %s21, 1
      %p121 = por %p119, %p120
      %p123 = scmp.ne.s32.totalorder %s108, %s122
      %p124 = scmp.eq.s32.totalorder %s21, 0
      %p125 = por %p123, %p124
      %s127 = sadd.s32 %s126, 1
      %p130 = scmp.eq.s32.totalorder %s15, 1
      %p131 = scmp.ne.s32.totalorder %s126, %s128
      %p132 = scmp.eq.s32.totalorder %s15, 0
      %p133 = por %p131, %p132
      %p134 = scmp.ne.s32.totalorder %s126, %s128
      %p135 = scmp.eq.s32.totalorder %s20, 1
      %p136 = por %p134, %p135
      %p137 = scmp.ne.s32.totalorder %s128, %s129
      %p138 = scmp.eq.s32.totalorder %s20, 0
      %p139 = por %p137, %p138
      %p140 = scmp.ne.s32.totalorder %s128, %s129
      %p141 = scmp.eq.s32.totalorder %s21, 1
      %p142 = por %p140, %p141
      %p144 = scmp.ne.s32.totalorder %s129, %s143
      %p145 = scmp.eq.s32.totalorder %s21, 0
      %p146 = por %p144, %p145
      %s148 = sadd.s32 %s147, 1
      %p151 = scmp.eq.s32.totalorder %s15, 1
      %p152 = scmp.ne.s32.totalorder %s147, %s149
      %p153 = scmp.eq.s32.totalorder %s15, 0
      %p154 = por %p152, %p153
      %p155 = scmp.ne.s32.totalorder %s147, %s149
      %p156 = scmp.eq.s32.totalorder %s20, 1
      %p157 = por %p155, %p156
      %p158 = scmp.ne.s32.totalorder %s149, %s150
      %p159 = scmp.eq.s32.totalorder %s20, 0
      %p160 = por %p158, %p159
      %p161 = scmp.ne.s32.totalorder %s149, %s150
      %p162 = scmp.eq.s32.totalorder %s21, 1
      %p163 = por %p161, %p162
      %p165 = scmp.ne.s32.totalorder %s150, %s164
      %p166 = scmp.eq.s32.totalorder %s21, 0
      %p167 = por %p165, %p166
      %s168 = ssub.s32 %s22, %s34
      %s169 = ssub.s32 %s23, %s30
      %s170 = sor.u32 %s168, %s169
      %p171 = scmp.eq.s32.totalorder %s170, 0
      %s173 = sadd.s32 %s172, 1
      %s174 = scalar_select %p171, %s172, %s173
      %p177 = pneg %p171
      %p178 = scmp.eq.s32.totalorder %s15, 1
      %p179 = por %p177, %p178
      %p180 = scmp.ne.s32.totalorder %s172, %s175
      %p181 = scmp.eq.s32.totalorder %s15, 0
      %p182 = por %p180, %p181
      %p183 = scmp.ne.s32.totalorder %s172, %s175
      %p184 = scmp.eq.s32.totalorder %s20, 1
      %p185 = por %p183, %p184
      %p186 = scmp.ne.s32.totalorder %s175, %s176
      %p187 = scmp.eq.s32.totalorder %s20, 0
      %p188 = por %p186, %p187
      %p189 = scmp.ne.s32.totalorder %s175, %s176
      %p190 = scmp.eq.s32.totalorder %s21, 1
      %p191 = por %p189, %p190
      %p193 = scmp.ne.s32.totalorder %s176, %s192
      %p194 = scmp.eq.s32.totalorder %s21, 0
      %p195 = por %p193, %p194
      %p196 = scmp.le.s32.totalorder 1, %s15
      %p197 = scmp.lt.s32.totalorder %s15, 3
      %p198 = pnand %p196, %p197
      %p199 = pneg %p198
      // Predicated region
      $region9: #{tpu_custom_call.1} parent=5 // pred_check
        _
      $region10: #{tpu_custom_call.1} parent=5 // pred_check_branch
        %201 = sbr.rel (%p198) target = $region12
      $region11: #{tpu_custom_call.1} parent=5 // pred_region
        %s202 = ssub.s32 %s15, 1
        // Predicated region
        $region13: #{tpu_custom_call.1} parent=11 // pred_check
          %p203 = pneg %p76
        $region14: #{tpu_custom_call.1} parent=11 // pred_check_branch
          %205 = sbr.rel (%p203) target = $region16
        $region15: #{tpu_custom_call.1} parent=11 // pred_region
          _
        $region16: #{tpu_custom_call.1} parent=11 // pred_fallthru
          _
        // Predicated region
        $region17: #{tpu_custom_call.1} parent=11 // pred_check
          %p206 = pneg %p97
        $region18: #{tpu_custom_call.1} parent=11 // pred_check_branch
          %208 = sbr.rel (%p206) target = $region20
        $region19: #{tpu_custom_call.1} parent=11 // pred_region
          _
        $region20: #{tpu_custom_call.1} parent=11 // pred_fallthru
          _
        // Predicated region
        $region21: #{tpu_custom_call.1} parent=11 // pred_check
          %p209 = pneg %p118
        $region22: #{tpu_custom_call.1} parent=11 // pred_check_branch
          %211 = sbr.rel (%p209) target = $region24
        $region23: #{tpu_custom_call.1} parent=11 // pred_region
          _
        $region24: #{tpu_custom_call.1} parent=11 // pred_fallthru
          _
        // Predicated region
        $region25: #{tpu_custom_call.1} parent=11 // pred_check
          %p212 = pneg %p139
        $region26: #{tpu_custom_call.1} parent=11 // pred_check_branch
          %214 = sbr.rel (%p212) target = $region28
        $region27: #{tpu_custom_call.1} parent=11 // pred_region
          _
        $region28: #{tpu_custom_call.1} parent=11 // pred_fallthru
          _
        // Predicated region
        $region29: #{tpu_custom_call.1} parent=11 // pred_check
          %p215 = pneg %p160
        $region30: #{tpu_custom_call.1} parent=11 // pred_check_branch
          %217 = sbr.rel (%p215) target = $region32
        $region31: #{tpu_custom_call.1} parent=11 // pred_region
          _
        $region32: #{tpu_custom_call.1} parent=11 // pred_fallthru
          _
      $region12: #{tpu_custom_call.1} parent=5 // pred_fallthru
        _
      %p218 = scmp.lt.s32.totalorder %s15, 2
      // Predicated region
      $region33: #{tpu_custom_call.1} parent=5 // pred_check
        %p219 = pneg %p218
      $region34: #{tpu_custom_call.1} parent=5 // pred_check_branch
        %221 = sbr.rel (%p219) target = $region36
      $region35: #{tpu_custom_call.1} parent=5 // pred_region
        // Predicated region
        $region37: #{tpu_custom_call.1} parent=35 // pred_check
          %p222 = pneg %p49
        $region38: #{tpu_custom_call.1} parent=35 // pred_check_branch
          %224 = sbr.rel (%p222) target = $region40
        $region39: #{tpu_custom_call.1} parent=35 // pred_region
          %p225 = scmp.lt.s32.totalorder %s22, 1
          %s226 = scalar_select %p225, %s22, 1
          %p227 = scmp.lt.s32.totalorder %s23, 0
          %s228 = scalar_select %p227, %s23, 0
          %s229 = smul.addr %s228, 3
          %s230 = smul.addr %s226, 3
          %s231 = sadd.s32 %s229, %s230
          %s232 = smul.addr %s231, 4
          %s233 = scalar_lea.vmem %s0, %s232
        $region40: #{tpu_custom_call.1} parent=35 // pred_fallthru
          _
      $region36: #{tpu_custom_call.1} parent=5 // pred_fallthru
        _
      %p234 = scmp.le.s32.totalorder 1, %s15
      %p235 = scmp.lt.s32.totalorder %s15, 3
      %p236 = pnand %p234, %p235
      %p237 = pneg %p236
      // Predicated region
      $region41: #{tpu_custom_call.1} parent=5 // pred_check
        _
      $region42: #{tpu_custom_call.1} parent=5 // pred_check_branch
        %239 = sbr.rel (%p236) target = $region44
      $region43: #{tpu_custom_call.1} parent=5 // pred_region
        %s240 = ssub.s32 %s15, 1
        %p241 = scmp.lt.s32.totalorder %s24, 1
        %s242 = scalar_select %p241, %s24, 1
        %p243 = scmp.lt.s32.totalorder %s25, 0
        %s244 = scalar_select %p243, %s25, 0
        %s245 = smul.addr %s244, 3
        %s246 = smul.addr %s242, 3
        %s247 = sadd.s32 %s245, %s246
        %s248 = smul.addr %s247, 4
        %s249 = scalar_lea.vmem %s0, %s248
        %p250 = pneg %p55
        %p251 = pneg %p52
        %p252 = pneg %p76
        %p253 = pneg %p73
        %p254 = pneg %p97
        %p255 = pneg %p94
        %p256 = pneg %p118
        %p257 = pneg %p115
        %p258 = pneg %p139
        %p259 = pneg %p136
        %p260 = pneg %p160
        %p261 = pneg %p157
        %p262 = pneg %p188
        %p263 = pneg %p185
        %s264 = sand.u32 %s175, 1
        %s265 = scalar_lea.sflag [#allocation3], %s264
        %s266 = sand.u32 %s175, 1
        %s267 = smul.addr %s266, 16
        %s268 = scalar_lea.vmem [#allocation2], %s267
        %p269 = scmp.lt.s32.totalorder %s24, 1
        %s270 = scalar_select %p269, %s24, 1
        %p271 = scmp.lt.s32.totalorder %s25, 0
        %s272 = scalar_select %p271, %s25, 0
        %s273 = smul.addr %s272, 3
        %s274 = smul.addr %s270, 3
        %s275 = sadd.s32 %s273, %s274
        %s276 = smul.addr %s275, 4
        %s277 = scalar_lea.vmem %s0, %s276
        %s278 = smul.u32 2, %s25
        %v279 = vld [vmem:[%s277] sm:$0xff]
        %v280 = vld [vmem:[%s277 + $0x8] sm:$0xf]
        %v281 = vld [vmem:[%s5] sm:$0x7]
        %v282 = vld [vmem:[%s1] sm:$0xff]
        %s283 = scalar_lea.vmem %s1, 24
        %v284 = vld [vmem:[%s283] sm:$0xff]
        %v287 = vcombine.high %v279, %v279
        %288 = vrot.lane.b32.xlu0 %v279, 112
        %v289 = vpop.permute.xlu0 %288
        %290 = vrot.lane.b32.xlu0 %v287, 112
        %v291 = vpop.permute.xlu0 %290
        %292 = vrot.lane.b32.xlu0 %v280, 112
        %v293 = vpop.permute.xlu0 %292
        %vm294 = vcmask 916480
        %v295 = vsel %vm294, %v289, %v291
        %v296 = vsel %vm294, %v291, %v293
        %vm297 = vcmask 31744
        %v299 = vsel %vm297, %v284, 0
        %vm301 = vcmask 1043456
        %v302 = vsel %vm301, %v295, 0
        %v304 = vsel %vm301, %v296, 0
        %v306 = vsel %vm301, %v293, 0
        %308 = vmatprep.subr.mxu0 %v304
        %309 = vmatpush1.msra.mxu0 %v302
        %310 = vmatprep.subr.mxu0 0.0
        %311 = vmatpush1.msra.mxu0 0.0
        %312 = vmatprep.subr.mxu0 0.0
        %313 = vmatpush1.msra.mxu0 0.0
        %314 = vmatprep.subr.mxu0 0.0
        %315 = vmatpush1.msra.mxu0 0.0
        %316 = vmatprep.subr.mxu0 0.0
        %317 = vmatpush1.msra.mxu0 0.0
        %318 = vmatprep.subr.mxu0 0.0
        %319 = vmatpush1.msra.mxu0 0.0
        %320 = vmatprep.subr.mxu0 0.0
        %321 = vmatpush1.msra.mxu0 0.0
        %322 = vmatprep.subr.mxu0 0.0
        %323 = vmatpush1.msra.mxu0 0.0
        %324 = vmatprep.subr.mxu0 0.0
        %325 = vmatpush1.msra.mxu0 0.0
        %326 = vmatprep.subr.mxu0 0.0
        %327 = vmatpush1.msra.mxu0 0.0
        %328 = vmatprep.subr.mxu0 0.0
        %329 = vmatpush1.msra.mxu0 0.0
        %330 = vmatprep.subr.mxu0 0.0
        %331 = vmatpush1.msra.mxu0 0.0
        %332 = vmatprep.subr.mxu0 0.0
        %333 = vmatpush1.msra.mxu0 0.0
        %334 = vmatprep.subr.mxu0 0.0
        %335 = vmatpush1.msra.mxu0 0.0
        %336 = vmatprep.subr.mxu0 0.0
        %337 = vmatpush1.msra.mxu0 0.0
        %338 = vmatprep.subr.mxu0 0.0
        %339 = vmatpush1.msra.mxu0 0.0
        %340 = vmatprep.subr.mxu0 0.0
        %341 = vmatpush1.msra.mxu0 0.0
        %342 = vmatprep.subr.mxu0 0.0
        %343 = vmatpush1.msra.mxu0 0.0
        %344 = vmatprep.subr.mxu0 0.0
        %345 = vmatpush1.msra.mxu0 0.0
        %346 = vmatprep.subr.mxu0 0.0
        %347 = vmatpush1.msra.mxu0 0.0
        %348 = vmatprep.subr.mxu0 0.0
        %349 = vmatpush1.msra.mxu0 0.0
        %350 = vmatprep.subr.mxu0 0.0
        %351 = vmatpush1.msra.mxu0 0.0
        %352 = vmatprep.subr.mxu0 0.0
        %353 = vmatpush1.msra.mxu0 0.0
        %354 = vmatprep.subr.mxu0 0.0
        %355 = vmatpush1.msra.mxu0 0.0
        %356 = vmatprep.subr.mxu0 0.0
        %357 = vmatpush1.msra.mxu0 0.0
        %358 = vmatprep.subr.mxu0 0.0
        %359 = vmatpush1.msra.mxu0 0.0
        %360 = vmatprep.subr.mxu0 0.0
        %361 = vmatpush1.msra.mxu0 0.0
        %362 = vmatprep.subr.mxu0 0.0
        %363 = vmatpush1.msra.mxu0 0.0
        %364 = vmatprep.subr.mxu0 0.0
        %365 = vmatpush1.msra.mxu0 0.0
        %366 = vmatprep.subr.mxu0 0.0
        %367 = vmatpush1.msra.mxu0 0.0
        %368 = vmatprep.subr.mxu0 0.0
        %369 = vmatpush1.msra.mxu0 0.0
        %370 = vmatprep.subr.mxu0 0.0
        %371 = vmatpush1.msra.mxu0 0.0
        %372 = vmatprep.mubr.f32.mxu0 0.0
        %373 = vmatmul.mubr.f32.gmra.mrb[0].mxu0 %v299
        %v374 = vpop.f32.mrb[0].mxu0
        %v375 = vadd.f32 0.0, %v374
        %v376 = vpop.f32.mrb[0].mxu0
        %v377 = vadd.f32 0.0, %v376
        %378 = vdwg.mxu0
        %379 = vmatprep.subr.mxu0 0.0
        %380 = vmatpush1.msra.mxu0 %v306
        %381 = vmatprep.subr.mxu0 0.0
        %382 = vmatpush1.msra.mxu0 0.0
        %383 = vmatprep.subr.mxu0 0.0
        %384 = vmatpush1.msra.mxu0 0.0
        %385 = vmatprep.subr.mxu0 0.0
        %386 = vmatpush1.msra.mxu0 0.0
        %387 = vmatprep.subr.mxu0 0.0
        %388 = vmatpush1.msra.mxu0 0.0
        %389 = vmatprep.subr.mxu0 0.0
        %390 = vmatpush1.msra.mxu0 0.0
        %391 = vmatprep.subr.mxu0 0.0
        %392 = vmatpush1.msra.mxu0 0.0
        %393 = vmatprep.subr.mxu0 0.0
        %394 = vmatpush1.msra.mxu0 0.0
        %395 = vmatprep.subr.mxu0 0.0
        %396 = vmatpush1.msra.mxu0 0.0
        %397 = vmatprep.subr.mxu0 0.0
        %398 = vmatpush1.msra.mxu0 0.0
        %399 = vmatprep.subr.mxu0 0.0
        %400 = vmatpush1.msra.mxu0 0.0
        %401 = vmatprep.subr.mxu0 0.0
        %402 = vmatpush1.msra.mxu0 0.0
        %403 = vmatprep.subr.mxu0 0.0
        %404 = vmatpush1.msra.mxu0 0.0
        %405 = vmatprep.subr.mxu0 0.0
        %406 = vmatpush1.msra.mxu0 0.0
        %407 = vmatprep.subr.mxu0 0.0
        %408 = vmatpush1.msra.mxu0 0.0
        %409 = vmatprep.subr.mxu0 0.0
        %410 = vmatpush1.msra.mxu0 0.0
        %411 = vmatprep.subr.mxu0 0.0
        %412 = vmatpush1.msra.mxu0 0.0
        %413 = vmatprep.subr.mxu0 0.0
        %414 = vmatpush1.msra.mxu0 0.0
        %415 = vmatprep.subr.mxu0 0.0
        %416 = vmatpush1.msra.mxu0 0.0
        %417 = vmatprep.subr.mxu0 0.0
        %418 = vmatpush1.msra.mxu0 0.0
        %419 = vmatprep.subr.mxu0 0.0
        %420 = vmatpush1.msra.mxu0 0.0
        %421 = vmatprep.subr.mxu0 0.0
        %422 = vmatpush1.msra.mxu0 0.0
        %423 = vmatprep.subr.mxu0 0.0
        %424 = vmatpush1.msra.mxu0 0.0
        %425 = vmatprep.subr.mxu0 0.0
        %426 = vmatpush1.msra.mxu0 0.0
        %427 = vmatprep.subr.mxu0 0.0
        %428 = vmatpush1.msra.mxu0 0.0
        %429 = vmatprep.subr.mxu0 0.0
        %430 = vmatpush1.msra.mxu0 0.0
        %431 = vmatprep.subr.mxu0 0.0
        %432 = vmatpush1.msra.mxu0 0.0
        %433 = vmatprep.subr.mxu0 0.0
        %434 = vmatpush1.msra.mxu0 0.0
        %435 = vmatprep.subr.mxu0 0.0
        %436 = vmatpush1.msra.mxu0 0.0
        %437 = vmatprep.subr.mxu0 0.0
        %438 = vmatpush1.msra.mxu0 0.0
        %439 = vmatprep.subr.mxu0 0.0
        %440 = vmatpush1.msra.mxu0 0.0
        %441 = vmatprep.subr.mxu0 0.0
        %442 = vmatpush1.msra.mxu0 0.0
        %443 = vmatprep.mubr.f32.mxu0 0.0
        %444 = vmatmul.mubr.f32.gmra.mrb[0].mxu0 %v299
        %v445 = vpop.f32.mrb[0].mxu0
        %v446 = vadd.f32 0.0, %v445
        %v447 = vpop.f32.mrb[0].mxu0
        %448 = vdwg.mxu0
        %v450 = vsel %vm297, %v282, 0
        %v452 = vsel %vm301, %v279, 0
        %v454 = vsel %vm301, %v287, 0
        %v456 = vsel %vm301, %v280, 0
        %458 = vmatprep.subr.mxu0 %v454
        %459 = vmatpush1.msra.mxu0 %v452
        %460 = vmatprep.subr.mxu0 0.0
        %461 = vmatpush1.msra.mxu0 0.0
        %462 = vmatprep.subr.mxu0 0.0
        %463 = vmatpush1.msra.mxu0 0.0
        %464 = vmatprep.subr.mxu0 0.0
        %465 = vmatpush1.msra.mxu0 0.0
        %466 = vmatprep.subr.mxu0 0.0
        %467 = vmatpush1.msra.mxu0 0.0
        %468 = vmatprep.subr.mxu0 0.0
        %469 = vmatpush1.msra.mxu0 0.0
        %470 = vmatprep.subr.mxu0 0.0
        %471 = vmatpush1.msra.mxu0 0.0
        %472 = vmatprep.subr.mxu0 0.0
        %473 = vmatpush1.msra.mxu0 0.0
        %474 = vmatprep.subr.mxu0 0.0
        %475 = vmatpush1.msra.mxu0 0.0
        %476 = vmatprep.subr.mxu0 0.0
        %477 = vmatpush1.msra.mxu0 0.0
        %478 = vmatprep.subr.mxu0 0.0
        %479 = vmatpush1.msra.mxu0 0.0
        %480 = vmatprep.subr.mxu0 0.0
        %481 = vmatpush1.msra.mxu0 0.0
        %482 = vmatprep.subr.mxu0 0.0
        %483 = vmatpush1.msra.mxu0 0.0
        %484 = vmatprep.subr.mxu0 0.0
        %485 = vmatpush1.msra.mxu0 0.0
        %486 = vmatprep.subr.mxu0 0.0
        %487 = vmatpush1.msra.mxu0 0.0
        %488 = vmatprep.subr.mxu0 0.0
        %489 = vmatpush1.msra.mxu0 0.0
        %490 = vmatprep.subr.mxu0 0.0
        %491 = vmatpush1.msra.mxu0 0.0
        %492 = vmatprep.subr.mxu0 0.0
        %493 = vmatpush1.msra.mxu0 0.0
        %494 = vmatprep.subr.mxu0 0.0
        %495 = vmatpush1.msra.mxu0 0.0
        %496 = vmatprep.subr.mxu0 0.0
        %497 = vmatpush1.msra.mxu0 0.0
        %498 = vmatprep.subr.mxu0 0.0
        %499 = vmatpush1.msra.mxu0 0.0
        %500 = vmatprep.subr.mxu0 0.0
        %501 = vmatpush1.msra.mxu0 0.0
        %502 = vmatprep.subr.mxu0 0.0
        %503 = vmatpush1.msra.mxu0 0.0
        %504 = vmatprep.subr.mxu0 0.0
        %505 = vmatpush1.msra.mxu0 0.0
        %506 = vmatprep.subr.mxu0 0.0
        %507 = vmatpush1.msra.mxu0 0.0
        %508 = vmatprep.subr.mxu0 0.0
        %509 = vmatpush1.msra.mxu0 0.0
        %510 = vmatprep.subr.mxu0 0.0
        %511 = vmatpush1.msra.mxu0 0.0
        %512 = vmatprep.subr.mxu0 0.0
        %513 = vmatpush1.msra.mxu0 0.0
        %514 = vmatprep.subr.mxu0 0.0
        %515 = vmatpush1.msra.mxu0 0.0
        %516 = vmatprep.subr.mxu0 0.0
        %517 = vmatpush1.msra.mxu0 0.0
        %518 = vmatprep.subr.mxu0 0.0
        %519 = vmatpush1.msra.mxu0 0.0
        %520 = vmatprep.subr.mxu0 0.0
        %521 = vmatpush1.msra.mxu0 0.0
        %522 = vmatprep.mubr.f32.mxu0 0.0
        %523 = vmatmul.mubr.f32.gmra.mrb[0].mxu0 %v450
        %v524 = vpop.f32.mrb[0].mxu0
        %v525 = vadd.f32 %v375, %v524
        %v526 = vpop.f32.mrb[0].mxu0
        %v527 = vadd.f32 %v377, %v526
        %528 = vdwg.mxu0
        %529 = vmatprep.subr.mxu0 0.0
        %530 = vmatpush1.msra.mxu0 %v456
        %531 = vmatprep.subr.mxu0 0.0
        %532 = vmatpush1.msra.mxu0 0.0
        %533 = vmatprep.subr.mxu0 0.0
        %534 = vmatpush1.msra.mxu0 0.0
        %535 = vmatprep.subr.mxu0 0.0
        %536 = vmatpush1.msra.mxu0 0.0
        %537 = vmatprep.subr.mxu0 0.0
        %538 = vmatpush1.msra.mxu0 0.0
        %539 = vmatprep.subr.mxu0 0.0
        %540 = vmatpush1.msra.mxu0 0.0
        %541 = vmatprep.subr.mxu0 0.0
        %542 = vmatpush1.msra.mxu0 0.0
        %543 = vmatprep.subr.mxu0 0.0
        %544 = vmatpush1.msra.mxu0 0.0
        %545 = vmatprep.subr.mxu0 0.0
        %546 = vmatpush1.msra.mxu0 0.0
        %547 = vmatprep.subr.mxu0 0.0
        %548 = vmatpush1.msra.mxu0 0.0
        %549 = vmatprep.subr.mxu0 0.0
        %550 = vmatpush1.msra.mxu0 0.0
        %551 = vmatprep.subr.mxu0 0.0
        %552 = vmatpush1.msra.mxu0 0.0
        %553 = vmatprep.subr.mxu0 0.0
        %554 = vmatpush1.msra.mxu0 0.0
        %555 = vmatprep.subr.mxu0 0.0
        %556 = vmatpush1.msra.mxu0 0.0
        %557 = vmatprep.subr.mxu0 0.0
        %558 = vmatpush1.msra.mxu0 0.0
        %559 = vmatprep.subr.mxu0 0.0
        %560 = vmatpush1.msra.mxu0 0.0
        %561 = vmatprep.subr.mxu0 0.0
        %562 = vmatpush1.msra.mxu0 0.0
        %563 = vmatprep.subr.mxu0 0.0
        %564 = vmatpush1.msra.mxu0 0.0
        %565 = vmatprep.subr.mxu0 0.0
        %566 = vmatpush1.msra.mxu0 0.0
        %567 = vmatprep.subr.mxu0 0.0
        %568 = vmatpush1.msra.mxu0 0.0
        %569 = vmatprep.subr.mxu0 0.0
        %570 = vmatpush1.msra.mxu0 0.0
        %571 = vmatprep.subr.mxu0 0.0
        %572 = vmatpush1.msra.mxu0 0.0
        %573 = vmatprep.subr.mxu0 0.0
        %574 = vmatpush1.msra.mxu0 0.0
        %575 = vmatprep.subr.mxu0 0.0
        %576 = vmatpush1.msra.mxu0 0.0
        %577 = vmatprep.subr.mxu0 0.0
        %578 = vmatpush1.msra.mxu0 0.0
        %579 = vmatprep.subr.mxu0 0.0
        %580 = vmatpush1.msra.mxu0 0.0
        %581 = vmatprep.subr.mxu0 0.0
        %582 = vmatpush1.msra.mxu0 0.0
        %583 = vmatprep.subr.mxu0 0.0
        %584 = vmatpush1.msra.mxu0 0.0
        %585 = vmatprep.subr.mxu0 0.0
        %586 = vmatpush1.msra.mxu0 0.0
        %587 = vmatprep.subr.mxu0 0.0
        %588 = vmatpush1.msra.mxu0 0.0
        %589 = vmatprep.subr.mxu0 0.0
        %590 = vmatpush1.msra.mxu0 0.0
        %591 = vmatprep.subr.mxu0 0.0
        %592 = vmatpush1.msra.mxu0 0.0
        %593 = vmatprep.mubr.f32.mxu0 0.0
        %594 = vmatmul.mubr.f32.gmra.mrb[0].mxu0 %v450
        %v595 = vpop.f32.mrb[0].mxu0
        %v596 = vadd.f32 %v446, %v595
        %v597 = vpop.f32.mrb[0].mxu0
        %598 = vdwg.mxu0
        %s599 = scalar_lea.vmem %s1, 48
        %v600 = vld [vmem:[%s599] sm:$0xff]
        %601 = vrot.lane.b32.xlu0 %v279, 96
        %v602 = vpop.permute.xlu0 %601
        %603 = vrot.lane.b32.xlu0 %v287, 96
        %v604 = vpop.permute.xlu0 %603
        %605 = vrot.lane.b32.xlu0 %v280, 96
        %v606 = vpop.permute.xlu0 %605
        %vm607 = vcmask 785408
        %v608 = vsel %vm607, %v602, %v604
        %v609 = vsel %vm607, %v604, %v606
        %v611 = vsel %vm297, %v600, 0
        %v613 = vsel %vm301, %v608, 0
        %v615 = vsel %vm301, %v609, 0
        %v617 = vsel %vm301, %v606, 0
        %619 = vmatprep.subr.mxu0 %v615
        %620 = vmatpush1.msra.mxu0 %v613
        %621 = vmatprep.subr.mxu0 0.0
        %622 = vmatpush1.msra.mxu0 0.0
        %623 = vmatprep.subr.mxu0 0.0
        %624 = vmatpush1.msra.mxu0 0.0
        %625 = vmatprep.subr.mxu0 0.0
        %626 = vmatpush1.msra.mxu0 0.0
        %627 = vmatprep.subr.mxu0 0.0
        %628 = vmatpush1.msra.mxu0 0.0
        %629 = vmatprep.subr.mxu0 0.0
        %630 = vmatpush1.msra.mxu0 0.0
        %631 = vmatprep.subr.mxu0 0.0
        %632 = vmatpush1.msra.mxu0 0.0
        %633 = vmatprep.subr.mxu0 0.0
        %634 = vmatpush1.msra.mxu0 0.0
        %635 = vmatprep.subr.mxu0 0.0
        %636 = vmatpush1.msra.mxu0 0.0
        %637 = vmatprep.subr.mxu0 0.0
        %638 = vmatpush1.msra.mxu0 0.0
        %639 = vmatprep.subr.mxu0 0.0
        %640 = vmatpush1.msra.mxu0 0.0
        %641 = vmatprep.subr.mxu0 0.0
        %642 = vmatpush1.msra.mxu0 0.0
        %643 = vmatprep.subr.mxu0 0.0
        %644 = vmatpush1.msra.mxu0 0.0
        %645 = vmatprep.subr.mxu0 0.0
        %646 = vmatpush1.msra.mxu0 0.0
        %647 = vmatprep.subr.mxu0 0.0
        %648 = vmatpush1.msra.mxu0 0.0
        %649 = vmatprep.subr.mxu0 0.0
        %650 = vmatpush1.msra.mxu0 0.0
        %651 = vmatprep.subr.mxu0 0.0
        %652 = vmatpush1.msra.mxu0 0.0
        %653 = vmatprep.subr.mxu0 0.0
        %654 = vmatpush1.msra.mxu0 0.0
        %655 = vmatprep.subr.mxu0 0.0
        %656 = vmatpush1.msra.mxu0 0.0
        %657 = vmatprep.subr.mxu0 0.0
        %658 = vmatpush1.msra.mxu0 0.0
        %659 = vmatprep.subr.mxu0 0.0
        %660 = vmatpush1.msra.mxu0 0.0
        %661 = vmatprep.subr.mxu0 0.0
        %662 = vmatpush1.msra.mxu0 0.0
        %663 = vmatprep.subr.mxu0 0.0
        %664 = vmatpush1.msra.mxu0 0.0
        %665 = vmatprep.subr.mxu0 0.0
        %666 = vmatpush1.msra.mxu0 0.0
        %667 = vmatprep.subr.mxu0 0.0
        %668 = vmatpush1.msra.mxu0 0.0
        %669 = vmatprep.subr.mxu0 0.0
        %670 = vmatpush1.msra.mxu0 0.0
        %671 = vmatprep.subr.mxu0 0.0
        %672 = vmatpush1.msra.mxu0 0.0
        %673 = vmatprep.subr.mxu0 0.0
        %674 = vmatpush1.msra.mxu0 0.0
        %675 = vmatprep.subr.mxu0 0.0
        %676 = vmatpush1.msra.mxu0 0.0
        %677 = vmatprep.subr.mxu0 0.0
        %678 = vmatpush1.msra.mxu0 0.0
        %679 = vmatprep.subr.mxu0 0.0
        %680 = vmatpush1.msra.mxu0 0.0
        %681 = vmatprep.subr.mxu0 0.0
        %682 = vmatpush1.msra.mxu0 0.0
        %683 = vmatprep.mubr.f32.mxu0 0.0
        %684 = vmatmul.mubr.f32.gmra.mrb[0].mxu0 %v611
        %v685 = vpop.f32.mrb[0].mxu0
        %v686 = vadd.f32 0.0, %v685
        %v687 = vpop.f32.mrb[0].mxu0
        %v688 = vadd.f32 0.0, %v687
        %689 = vdwg.mxu0
        %690 = vmatprep.subr.mxu0 0.0
        %691 = vmatpush1.msra.mxu0 %v617
        %692 = vmatprep.subr.mxu0 0.0
        %693 = vmatpush1.msra.mxu0 0.0
        %694 = vmatprep.subr.mxu0 0.0
        %695 = vmatpush1.msra.mxu0 0.0
        %696 = vmatprep.subr.mxu0 0.0
        %697 = vmatpush1.msra.mxu0 0.0
        %698 = vmatprep.subr.mxu0 0.0
        %699 = vmatpush1.msra.mxu0 0.0
        %700 = vmatprep.subr.mxu0 0.0
        %701 = vmatpush1.msra.mxu0 0.0
        %702 = vmatprep.subr.mxu0 0.0
        %703 = vmatpush1.msra.mxu0 0.0
        %704 = vmatprep.subr.mxu0 0.0
        %705 = vmatpush1.msra.mxu0 0.0
        %706 = vmatprep.subr.mxu0 0.0
        %707 = vmatpush1.msra.mxu0 0.0
        %708 = vmatprep.subr.mxu0 0.0
        %709 = vmatpush1.msra.mxu0 0.0
        %710 = vmatprep.subr.mxu0 0.0
        %711 = vmatpush1.msra.mxu0 0.0
        %712 = vmatprep.subr.mxu0 0.0
        %713 = vmatpush1.msra.mxu0 0.0
        %714 = vmatprep.subr.mxu0 0.0
        %715 = vmatpush1.msra.mxu0 0.0
        %716 = vmatprep.subr.mxu0 0.0
        %717 = vmatpush1.msra.mxu0 0.0
        %718 = vmatprep.subr.mxu0 0.0
        %719 = vmatpush1.msra.mxu0 0.0
        %720 = vmatprep.subr.mxu0 0.0
        %721 = vmatpush1.msra.mxu0 0.0
        %722 = vmatprep.subr.mxu0 0.0
        %723 = vmatpush1.msra.mxu0 0.0
        %724 = vmatprep.subr.mxu0 0.0
        %725 = vmatpush1.msra.mxu0 0.0
        %726 = vmatprep.subr.mxu0 0.0
        %727 = vmatpush1.msra.mxu0 0.0
        %728 = vmatprep.subr.mxu0 0.0
        %729 = vmatpush1.msra.mxu0 0.0
        %730 = vmatprep.subr.mxu0 0.0
        %731 = vmatpush1.msra.mxu0 0.0
        %732 = vmatprep.subr.mxu0 0.0
        %733 = vmatpush1.msra.mxu0 0.0
        %734 = vmatprep.subr.mxu0 0.0
        %735 = vmatpush1.msra.mxu0 0.0
        %736 = vmatprep.subr.mxu0 0.0
        %737 = vmatpush1.msra.mxu0 0.0
        %738 = vmatprep.subr.mxu0 0.0
        %739 = vmatpush1.msra.mxu0 0.0
        %740 = vmatprep.subr.mxu0 0.0
        %741 = vmatpush1.msra.mxu0 0.0
        %742 = vmatprep.subr.mxu0 0.0
        %743 = vmatpush1.msra.mxu0 0.0
        %744 = vmatprep.subr.mxu0 0.0
        %745 = vmatpush1.msra.mxu0 0.0
        %746 = vmatprep.subr.mxu0 0.0
        %747 = vmatpush1.msra.mxu0 0.0
        %748 = vmatprep.subr.mxu0 0.0
        %749 = vmatpush1.msra.mxu0 0.0
        %750 = vmatprep.subr.mxu0 0.0
        %751 = vmatpush1.msra.mxu0 0.0
        %752 = vmatprep.subr.mxu0 0.0
        %753 = vmatpush1.msra.mxu0 0.0
        %754 = vmatprep.mubr.f32.mxu0 0.0
        %755 = vmatmul.mubr.f32.gmra.mrb[0].mxu0 %v611
        %v756 = vpop.f32.mrb[0].mxu0
        %v757 = vadd.f32 0.0, %v756
        %v758 = vpop.f32.mrb[0].mxu0
        %759 = vdwg.mxu0
        %v760 = vadd.f32 %v525, %v686
        %v761 = vadd.f32 %v527, %v688
        %v762 = vadd.f32 %v596, %v757
        %vm763 = vcmp.ge.s32.totalorder %v281, 1
        %vm764 = vcmp.lt.s32.totalorder %v281, 16
        %vm765 = vmand %vm763, %vm764
        %v766 = vsel %vm765, 1, 0
        %v767 = vlaneseq
        %v768 = vshrl.u32 %v767, 7
        %v769 = vsub.s32 0, %v768
        %v770 = vrot.slane %v766, %v769
        %v771 = vlaneseq
        %v772 = vshrl.u32 %v771, 7
        %v773 = vsub.s32 1, %v772
        %v774 = vrot.slane %v766, %v773
        %v775 = vlaneseq
        %v776 = vshrl.u32 %v775, 7
        %v777 = vsub.s32 2, %v776
        %v778 = vrot.slane %v766, %v777
        %vm779 = vcmp.eq.s32.totalorder %v770, 1
        %vm780 = vcmp.eq.s32.totalorder %v774, 1
        %vm781 = vcmp.eq.s32.totalorder %v778, 1
        %v782 = vsel %vm779, %v760, 0.0
        %v783 = vsel %vm780, %v761, 0.0
        %v784 = vsel %vm781, %v762, 0.0
        %v785 = vadd.f32 %v782, 0.0
        %v786 = vadd.f32 %v783, 0.0
        %v787 = vadd.f32 %v784, 0.0
        %s788 = scalar_lea.vmem %s1, 8
        %v789 = vld [vmem:[%s788] sm:$0xff]
        %s790 = scalar_lea.vmem %s1, 32
        %v791 = vld [vmem:[%s790] sm:$0xff]
        %792 = vrot.lane.b32.xlu0 %v279, 111
        %v793 = vpop.permute.xlu0 %792
        %794 = vrot.lane.b32.xlu0 %v287, 111
        %v795 = vpop.permute.xlu0 %794
        %796 = vrot.lane.b32.xlu0 %v280, 111
        %v797 = vpop.permute.xlu0 %796
        %vm798 = vcmask 908288
        %v799 = vsel %vm798, %v793, %v795
        %v800 = vsel %vm798, %v795, %v797
        %v802 = vsel %vm297, %v791, 0
        %v804 = vsel %vm301, %v799, 0
        %v806 = vsel %vm301, %v800, 0
        %v808 = vsel %vm301, %v797, 0
        %810 = vmatprep.subr.mxu0 %v806
        %811 = vmatpush1.msra.mxu0 %v804
        %812 = vmatprep.subr.mxu0 0.0
        %813 = vmatpush1.msra.mxu0 0.0
        %814 = vmatprep.subr.mxu0 0.0
        %815 = vmatpush1.msra.mxu0 0.0
        %816 = vmatprep.subr.mxu0 0.0
        %817 = vmatpush1.msra.mxu0 0.0
        %818 = vmatprep.subr.mxu0 0.0
        %819 = vmatpush1.msra.mxu0 0.0
        %820 = vmatprep.subr.mxu0 0.0
        %821 = vmatpush1.msra.mxu0 0.0
        %822 = vmatprep.subr.mxu0 0.0
        %823 = vmatpush1.msra.mxu0 0.0
        %824 = vmatprep.subr.mxu0 0.0
        %825 = vmatpush1.msra.mxu0 0.0
        %826 = vmatprep.subr.mxu0 0.0
        %827 = vmatpush1.msra.mxu0 0.0
        %828 = vmatprep.subr.mxu0 0.0
        %829 = vmatpush1.msra.mxu0 0.0
        %830 = vmatprep.subr.mxu0 0.0
        %831 = vmatpush1.msra.mxu0 0.0
        %832 = vmatprep.subr.mxu0 0.0
        %833 = vmatpush1.msra.mxu0 0.0
        %834 = vmatprep.subr.mxu0 0.0
        %835 = vmatpush1.msra.mxu0 0.0
        %836 = vmatprep.subr.mxu0 0.0
        %837 = vmatpush1.msra.mxu0 0.0
        %838 = vmatprep.subr.mxu0 0.0
        %839 = vmatpush1.msra.mxu0 0.0
        %840 = vmatprep.subr.mxu0 0.0
        %841 = vmatpush1.msra.mxu0 0.0
        %842 = vmatprep.subr.mxu0 0.0
        %843 = vmatpush1.msra.mxu0 0.0
        %844 = vmatprep.subr.mxu0 0.0
        %845 = vmatpush1.msra.mxu0 0.0
        %846 = vmatprep.subr.mxu0 0.0
        %847 = vmatpush1.msra.mxu0 0.0
        %848 = vmatprep.subr.mxu0 0.0
        %849 = vmatpush1.msra.mxu0 0.0
        %850 = vmatprep.subr.mxu0 0.0
        %851 = vmatpush1.msra.mxu0 0.0
        %852 = vmatprep.subr.mxu0 0.0
        %853 = vmatpush1.msra.mxu0 0.0
        %854 = vmatprep.subr.mxu0 0.0
        %855 = vmatpush1.msra.mxu0 0.0
        %856 = vmatprep.subr.mxu0 0.0
        %857 = vmatpush1.msra.mxu0 0.0
        %858 = vmatprep.subr.mxu0 0.0
        %859 = vmatpush1.msra.mxu0 0.0
        %860 = vmatprep.subr.mxu0 0.0
        %861 = vmatpush1.msra.mxu0 0.0
        %862 = vmatprep.subr.mxu0 0.0
        %863 = vmatpush1.msra.mxu0 0.0
        %864 = vmatprep.subr.mxu0 0.0
        %865 = vmatpush1.msra.mxu0 0.0
        %866 = vmatprep.subr.mxu0 0.0
        %867 = vmatpush1.msra.mxu0 0.0
        %868 = vmatprep.subr.mxu0 0.0
        %869 = vmatpush1.msra.mxu0 0.0
        %870 = vmatprep.subr.mxu0 0.0
        %871 = vmatpush1.msra.mxu0 0.0
        %872 = vmatprep.subr.mxu0 0.0
        %873 = vmatpush1.msra.mxu0 0.0
        %874 = vmatprep.mubr.f32.mxu0 0.0
        %875 = vmatmul.mubr.f32.gmra.mrb[0].mxu0 %v802
        %v876 = vpop.f32.mrb[0].mxu0
        %v877 = vadd.f32 0.0, %v876
        %v878 = vpop.f32.mrb[0].mxu0
        %v879 = vadd.f32 0.0, %v878
        %880 = vdwg.mxu0
        %881 = vmatprep.subr.mxu0 0.0
        %882 = vmatpush1.msra.mxu0 %v808
        %883 = vmatprep.subr.mxu0 0.0
        %884 = vmatpush1.msra.mxu0 0.0
        %885 = vmatprep.subr.mxu0 0.0
        %886 = vmatpush1.msra.mxu0 0.0
        %887 = vmatprep.subr.mxu0 0.0
        %888 = vmatpush1.msra.mxu0 0.0
        %889 = vmatprep.subr.mxu0 0.0
        %890 = vmatpush1.msra.mxu0 0.0
        %891 = vmatprep.subr.mxu0 0.0
        %892 = vmatpush1.msra.mxu0 0.0
        %893 = vmatprep.subr.mxu0 0.0
        %894 = vmatpush1.msra.mxu0 0.0
        %895 = vmatprep.subr.mxu0 0.0
        %896 = vmatpush1.msra.mxu0 0.0
        %897 = vmatprep.subr.mxu0 0.0
        %898 = vmatpush1.msra.mxu0 0.0
        %899 = vmatprep.subr.mxu0 0.0
        %900 = vmatpush1.msra.mxu0 0.0
        %901 = vmatprep.subr.mxu0 0.0
        %902 = vmatpush1.msra.mxu0 0.0
        %903 = vmatprep.subr.mxu0 0.0
        %904 = vmatpush1.msra.mxu0 0.0
        %905 = vmatprep.subr.mxu0 0.0
        %906 = vmatpush1.msra.mxu0 0.0
        %907 = vmatprep.subr.mxu0 0.0
        %908 = vmatpush1.msra.mxu0 0.0
        %909 = vmatprep.subr.mxu0 0.0
        %910 = vmatpush1.msra.mxu0 0.0
        %911 = vmatprep.subr.mxu0 0.0
        %912 = vmatpush1.msra.mxu0 0.0
        %913 = vmatprep.subr.mxu0 0.0
        %914 = vmatpush1.msra.mxu0 0.0
        %915 = vmatprep.subr.mxu0 0.0
        %916 = vmatpush1.msra.mxu0 0.0
        %917 = vmatprep.subr.mxu0 0.0
        %918 = vmatpush1.msra.mxu0 0.0
        %919 = vmatprep.subr.mxu0 0.0
        %920 = vmatpush1.msra.mxu0 0.0
        %921 = vmatprep.subr.mxu0 0.0
        %922 = vmatpush1.msra.mxu0 0.0
        %923 = vmatprep.subr.mxu0 0.0
        %924 = vmatpush1.msra.mxu0 0.0
        %925 = vmatprep.subr.mxu0 0.0
        %926 = vmatpush1.msra.mxu0 0.0
        %927 = vmatprep.subr.mxu0 0.0
        %928 = vmatpush1.msra.mxu0 0.0
        %929 = vmatprep.subr.mxu0 0.0
        %930 = vmatpush1.msra.mxu0 0.0
        %931 = vmatprep.subr.mxu0 0.0
        %932 = vmatpush1.msra.mxu0 0.0
        %933 = vmatprep.subr.mxu0 0.0
        %934 = vmatpush1.msra.mxu0 0.0
        %935 = vmatprep.subr.mxu0 0.0
        %936 = vmatpush1.msra.mxu0 0.0
        %937 = vmatprep.subr.mxu0 0.0
        %938 = vmatpush1.msra.mxu0 0.0
        %939 = vmatprep.subr.mxu0 0.0
        %940 = vmatpush1.msra.mxu0 0.0
        %941 = vmatprep.subr.mxu0 0.0
        %942 = vmatpush1.msra.mxu0 0.0
        %943 = vmatprep.subr.mxu0 0.0
        %944 = vmatpush1.msra.mxu0 0.0
        %945 = vmatprep.mubr.f32.mxu0 0.0
        %946 = vmatmul.mubr.f32.gmra.mrb[0].mxu0 %v802
        %v947 = vpop.f32.mrb[0].mxu0
        %v948 = vadd.f32 0.0, %v947
        %v949 = vpop.f32.mrb[0].mxu0
        %950 = vdwg.mxu0
        %951 = vrot.lane.b32.xlu0 %v279, 127
        %v952 = vpop.permute.xlu0 %951
        %953 = vrot.lane.b32.xlu0 %v287, 127
        %v954 = vpop.permute.xlu0 %953
        %955 = vrot.lane.b32.xlu0 %v280, 127
        %v956 = vpop.permute.xlu0 %955
        %vm957 = vcmask 1039360
        %v958 = vsel %vm957, %v952, %v954
        %v959 = vsel %vm957, %v954, %v956
        %v961 = vsel %vm297, %v789, 0
        %v963 = vsel %vm301, %v958, 0
        %v965 = vsel %vm301, %v959, 0
        %v967 = vsel %vm301, %v956, 0
        %969 = vmatprep.subr.mxu0 %v965
        %970 = vmatpush1.msra.mxu0 %v963
        %971 = vmatprep.subr.mxu0 0.0
        %972 = vmatpush1.msra.mxu0 0.0
        %973 = vmatprep.subr.mxu0 0.0
        %974 = vmatpush1.msra.mxu0 0.0
        %975 = vmatprep.subr.mxu0 0.0
        %976 = vmatpush1.msra.mxu0 0.0
        %977 = vmatprep.subr.mxu0 0.0
        %978 = vmatpush1.msra.mxu0 0.0
        %979 = vmatprep.subr.mxu0 0.0
        %980 = vmatpush1.msra.mxu0 0.0
        %981 = vmatprep.subr.mxu0 0.0
        %982 = vmatpush1.msra.mxu0 0.0
        %983 = vmatprep.subr.mxu0 0.0
        %984 = vmatpush1.msra.mxu0 0.0
        %985 = vmatprep.subr.mxu0 0.0
        %986 = vmatpush1.msra.mxu0 0.0
        %987 = vmatprep.subr.mxu0 0.0
        %988 = vmatpush1.msra.mxu0 0.0
        %989 = vmatprep.subr.mxu0 0.0
        %990 = vmatpush1.msra.mxu0 0.0
        %991 = vmatprep.subr.mxu0 0.0
        %992 = vmatpush1.msra.mxu0 0.0
        %993 = vmatprep.subr.mxu0 0.0
        %994 = vmatpush1.msra.mxu0 0.0
        %995 = vmatprep.subr.mxu0 0.0
        %996 = vmatpush1.msra.mxu0 0.0
        %997 = vmatprep.subr.mxu0 0.0
        %998 = vmatpush1.msra.mxu0 0.0
        %999 = vmatprep.subr.mxu0 0.0
        %1000 = vmatpush1.msra.mxu0 0.0
        %1001 = vmatprep.subr.mxu0 0.0
        %1002 = vmatpush1.msra.mxu0 0.0
        %1003 = vmatprep.subr.mxu0 0.0
        %1004 = vmatpush1.msra.mxu0 0.0
        %1005 = vmatprep.subr.mxu0 0.0
        %1006 = vmatpush1.msra.mxu0 0.0
        %1007 = vmatprep.subr.mxu0 0.0
        %1008 = vmatpush1.msra.mxu0 0.0
        %1009 = vmatprep.subr.mxu0 0.0
        %1010 = vmatpush1.msra.mxu0 0.0
        %1011 = vmatprep.subr.mxu0 0.0
        %1012 = vmatpush1.msra.mxu0 0.0
        %1013 = vmatprep.subr.mxu0 0.0
        %1014 = vmatpush1.msra.mxu0 0.0
        %1015 = vmatprep.subr.mxu0 0.0
        %1016 = vmatpush1.msra.mxu0 0.0
        %1017 = vmatprep.subr.mxu0 0.0
        %1018 = vmatpush1.msra.mxu0 0.0
        %1019 = vmatprep.subr.mxu0 0.0
        %1020 = vmatpush1.msra.mxu0 0.0
        %1021 = vmatprep.subr.mxu0 0.0
        %1022 = vmatpush1.msra.mxu0 0.0
        %1023 = vmatprep.subr.mxu0 0.0
        %1024 = vmatpush1.msra.mxu0 0.0
        %1025 = vmatprep.subr.mxu0 0.0
        %1026 = vmatpush1.msra.mxu0 0.0
        %1027 = vmatprep.subr.mxu0 0.0
        %1028 = vmatpush1.msra.mxu0 0.0
        %1029 = vmatprep.subr.mxu0 0.0
        %1030 = vmatpush1.msra.mxu0 0.0
        %1031 = vmatprep.subr.mxu0 0.0
        %1032 = vmatpush1.msra.mxu0 0.0
        %1033 = vmatprep.mubr.f32.mxu0 0.0
        %1034 = vmatmul.mubr.f32.gmra.mrb[0].mxu0 %v961
        %v1035 = vpop.f32.mrb[0].mxu0
        %v1036 = vadd.f32 %v877, %v1035
        %v1037 = vpop.f32.mrb[0].mxu0
        %v1038 = vadd.f32 %v879, %v1037
        %1039 = vdwg.mxu0
        %1040 = vmatprep.subr.mxu0 0.0
        %1041 = vmatpush1.msra.mxu0 %v967
        %1042 = vmatprep.subr.mxu0 0.0
        %1043 = vmatpush1.msra.mxu0 0.0
        %1044 = vmatprep.subr.mxu0 0.0
        %1045 = vmatpush1.msra.mxu0 0.0
        %1046 = vmatprep.subr.mxu0 0.0
        %1047 = vmatpush1.msra.mxu0 0.0
        %1048 = vmatprep.subr.mxu0 0.0
        %1049 = vmatpush1.msra.mxu0 0.0
        %1050 = vmatprep.subr.mxu0 0.0
        %1051 = vmatpush1.msra.mxu0 0.0
        %1052 = vmatprep.subr.mxu0 0.0
        %1053 = vmatpush1.msra.mxu0 0.0
        %1054 = vmatprep.subr.mxu0 0.0
        %1055 = vmatpush1.msra.mxu0 0.0
        %1056 = vmatprep.subr.mxu0 0.0
        %1057 = vmatpush1.msra.mxu0 0.0
        %1058 = vmatprep.subr.mxu0 0.0
        %1059 = vmatpush1.msra.mxu0 0.0
        %1060 = vmatprep.subr.mxu0 0.0
        %1061 = vmatpush1.msra.mxu0 0.0
        %1062 = vmatprep.subr.mxu0 0.0
        %1063 = vmatpush1.msra.mxu0 0.0
        %1064 = vmatprep.subr.mxu0 0.0
        %1065 = vmatpush1.msra.mxu0 0.0
        %1066 = vmatprep.subr.mxu0 0.0
        %1067 = vmatpush1.msra.mxu0 0.0
        %1068 = vmatprep.subr.mxu0 0.0
        %1069 = vmatpush1.msra.mxu0 0.0
        %1070 = vmatprep.subr.mxu0 0.0
        %1071 = vmatpush1.msra.mxu0 0.0
        %1072 = vmatprep.subr.mxu0 0.0
        %1073 = vmatpush1.msra.mxu0 0.0
        %1074 = vmatprep.subr.mxu0 0.0
        %1075 = vmatpush1.msra.mxu0 0.0
        %1076 = vmatprep.subr.mxu0 0.0
        %1077 = vmatpush1.msra.mxu0 0.0
        %1078 = vmatprep.subr.mxu0 0.0
        %1079 = vmatpush1.msra.mxu0 0.0
        %1080 = vmatprep.subr.mxu0 0.0
        %1081 = vmatpush1.msra.mxu0 0.0
        %1082 = vmatprep.subr.mxu0 0.0
        %1083 = vmatpush1.msra.mxu0 0.0
        %1084 = vmatprep.subr.mxu0 0.0
        %1085 = vmatpush1.msra.mxu0 0.0
        %1086 = vmatprep.subr.mxu0 0.0
        %1087 = vmatpush1.msra.mxu0 0.0
        %1088 = vmatprep.subr.mxu0 0.0
        %1089 = vmatpush1.msra.mxu0 0.0
        %1090 = vmatprep.subr.mxu0 0.0
        %1091 = vmatpush1.msra.mxu0 0.0
        %1092 = vmatprep.subr.mxu0 0.0
        %1093 = vmatpush1.msra.mxu0 0.0
        %1094 = vmatprep.subr.mxu0 0.0
        %1095 = vmatpush1.msra.mxu0 0.0
        %1096 = vmatprep.subr.mxu0 0.0
        %1097 = vmatpush1.msra.mxu0 0.0
        %1098 = vmatprep.subr.mxu0 0.0
        %1099 = vmatpush1.msra.mxu0 0.0
        %1100 = vmatprep.subr.mxu0 0.0
        %1101 = vmatpush1.msra.mxu0 0.0
        %1102 = vmatprep.subr.mxu0 0.0
        %1103 = vmatpush1.msra.mxu0 0.0
        %1104 = vmatprep.mubr.f32.mxu0 0.0
        %1105 = vmatmul.mubr.f32.gmra.mrb[0].mxu0 %v961
        %v1106 = vpop.f32.mrb[0].mxu0
        %v1107 = vadd.f32 %v948, %v1106
        %v1108 = vpop.f32.mrb[0].mxu0
        %1109 = vdwg.mxu0
        %s1110 = scalar_lea.vmem %s1, 56
        %v1111 = vld [vmem:[%s1110] sm:$0xff]
        %1112 = vrot.lane.b32.xlu0 %v279, 95
        %v1113 = vpop.permute.xlu0 %1112
        %1114 = vrot.lane.b32.xlu0 %v287, 95
        %v1115 = vpop.permute.xlu0 %1114
        %1116 = vrot.lane.b32.xlu0 %v280, 95
        %v1117 = vpop.permute.xlu0 %1116
        %vm1118 = vcmask 777216
        %v1119 = vsel %vm1118, %v1113, %v1115
        %v1120 = vsel %vm1118, %v1115, %v1117
        %v1122 = vsel %vm297, %v1111, 0
        %v1124 = vsel %vm301, %v1119, 0
        %v1126 = vsel %vm301, %v1120, 0
        %v1128 = vsel %vm301, %v1117, 0
        %1130 = vmatprep.subr.mxu0 %v1126
        %1131 = vmatpush1.msra.mxu0 %v1124
        %1132 = vmatprep.subr.mxu0 0.0
        %1133 = vmatpush1.msra.mxu0 0.0
        %1134 = vmatprep.subr.mxu0 0.0
        %1135 = vmatpush1.msra.mxu0 0.0
        %1136 = vmatprep.subr.mxu0 0.0
        %1137 = vmatpush1.msra.mxu0 0.0
        %1138 = vmatprep.subr.mxu0 0.0
        %1139 = vmatpush1.msra.mxu0 0.0
        %1140 = vmatprep.subr.mxu0 0.0
        %1141 = vmatpush1.msra.mxu0 0.0
        %1142 = vmatprep.subr.mxu0 0.0
        %1143 = vmatpush1.msra.mxu0 0.0
        %1144 = vmatprep.subr.mxu0 0.0
        %1145 = vmatpush1.msra.mxu0 0.0
        %1146 = vmatprep.subr.mxu0 0.0
        %1147 = vmatpush1.msra.mxu0 0.0
        %1148 = vmatprep.subr.mxu0 0.0
        %1149 = vmatpush1.msra.mxu0 0.0
        %1150 = vmatprep.subr.mxu0 0.0
        %1151 = vmatpush1.msra.mxu0 0.0
        %1152 = vmatprep.subr.mxu0 0.0
        %1153 = vmatpush1.msra.mxu0 0.0
        %1154 = vmatprep.subr.mxu0 0.0
        %1155 = vmatpush1.msra.mxu0 0.0
        %1156 = vmatprep.subr.mxu0 0.0
        %1157 = vmatpush1.msra.mxu0 0.0
        %1158 = vmatprep.subr.mxu0 0.0
        %1159 = vmatpush1.msra.mxu0 0.0
        %1160 = vmatprep.subr.mxu0 0.0
        %1161 = vmatpush1.msra.mxu0 0.0
        %1162 = vmatprep.subr.mxu0 0.0
        %1163 = vmatpush1.msra.mxu0 0.0
        %1164 = vmatprep.subr.mxu0 0.0
        %1165 = vmatpush1.msra.mxu0 0.0
        %1166 = vmatprep.subr.mxu0 0.0
        %1167 = vmatpush1.msra.mxu0 0.0
        %1168 = vmatprep.subr.mxu0 0.0
        %1169 = vmatpush1.msra.mxu0 0.0
        %1170 = vmatprep.subr.mxu0 0.0
        %1171 = vmatpush1.msra.mxu0 0.0
        %1172 = vmatprep.subr.mxu0 0.0
        %1173 = vmatpush1.msra.mxu0 0.0
        %1174 = vmatprep.subr.mxu0 0.0
        %1175 = vmatpush1.msra.mxu0 0.0
        %1176 = vmatprep.subr.mxu0 0.0
        %1177 = vmatpush1.msra.mxu0 0.0
        %1178 = vmatprep.subr.mxu0 0.0
        %1179 = vmatpush1.msra.mxu0 0.0
        %1180 = vmatprep.subr.mxu0 0.0
        %1181 = vmatpush1.msra.mxu0 0.0
        %1182 = vmatprep.subr.mxu0 0.0
        %1183 = vmatpush1.msra.mxu0 0.0
        %1184 = vmatprep.subr.mxu0 0.0
        %1185 = vmatpush1.msra.mxu0 0.0
        %1186 = vmatprep.subr.mxu0 0.0
        %1187 = vmatpush1.msra.mxu0 0.0
        %1188 = vmatprep.subr.mxu0 0.0
        %1189 = vmatpush1.msra.mxu0 0.0
        %1190 = vmatprep.subr.mxu0 0.0
        %1191 = vmatpush1.msra.mxu0 0.0
        %1192 = vmatprep.subr.mxu0 0.0
        %1193 = vmatpush1.msra.mxu0 0.0
        %1194 = vmatprep.mubr.f32.mxu0 0.0
        %1195 = vmatmul.mubr.f32.gmra.mrb[0].mxu0 %v1122
        %v1196 = vpop.f32.mrb[0].mxu0
        %v1197 = vadd.f32 0.0, %v1196
        %v1198 = vpop.f32.mrb[0].mxu0
        %v1199 = vadd.f32 0.0, %v1198
        %1200 = vdwg.mxu0
        %1201 = vmatprep.subr.mxu0 0.0
        %1202 = vmatpush1.msra.mxu0 %v1128
        %1203 = vmatprep.subr.mxu0 0.0
        %1204 = vmatpush1.msra.mxu0 0.0
        %1205 = vmatprep.subr.mxu0 0.0
        %1206 = vmatpush1.msra.mxu0 0.0
        %1207 = vmatprep.subr.mxu0 0.0
        %1208 = vmatpush1.msra.mxu0 0.0
        %1209 = vmatprep.subr.mxu0 0.0
        %1210 = vmatpush1.msra.mxu0 0.0
        %1211 = vmatprep.subr.mxu0 0.0
        %1212 = vmatpush1.msra.mxu0 0.0
        %1213 = vmatprep.subr.mxu0 0.0
        %1214 = vmatpush1.msra.mxu0 0.0
        %1215 = vmatprep.subr.mxu0 0.0
        %1216 = vmatpush1.msra.mxu0 0.0
        %1217 = vmatprep.subr.mxu0 0.0
        %1218 = vmatpush1.msra.mxu0 0.0
        %1219 = vmatprep.subr.mxu0 0.0
        %1220 = vmatpush1.msra.mxu0 0.0
        %1221 = vmatprep.subr.mxu0 0.0
        %1222 = vmatpush1.msra.mxu0 0.0
        %1223 = vmatprep.subr.mxu0 0.0
        %1224 = vmatpush1.msra.mxu0 0.0
        %1225 = vmatprep.subr.mxu0 0.0
        %1226 = vmatpush1.msra.mxu0 0.0
        %1227 = vmatprep.subr.mxu0 0.0
        %1228 = vmatpush1.msra.mxu0 0.0
        %1229 = vmatprep.subr.mxu0 0.0
        %1230 = vmatpush1.msra.mxu0 0.0
        %1231 = vmatprep.subr.mxu0 0.0
        %1232 = vmatpush1.msra.mxu0 0.0
        %1233 = vmatprep.subr.mxu0 0.0
        %1234 = vmatpush1.msra.mxu0 0.0
        %1235 = vmatprep.subr.mxu0 0.0
        %1236 = vmatpush1.msra.mxu0 0.0
        %1237 = vmatprep.subr.mxu0 0.0
        %1238 = vmatpush1.msra.mxu0 0.0
        %1239 = vmatprep.subr.mxu0 0.0
        %1240 = vmatpush1.msra.mxu0 0.0
        %1241 = vmatprep.subr.mxu0 0.0
        %1242 = vmatpush1.msra.mxu0 0.0
        %1243 = vmatprep.subr.mxu0 0.0
        %1244 = vmatpush1.msra.mxu0 0.0
        %1245 = vmatprep.subr.mxu0 0.0
        %1246 = vmatpush1.msra.mxu0 0.0
        %1247 = vmatprep.subr.mxu0 0.0
        %1248 = vmatpush1.msra.mxu0 0.0
        %1249 = vmatprep.subr.mxu0 0.0
        %1250 = vmatpush1.msra.mxu0 0.0
        %1251 = vmatprep.subr.mxu0 0.0
        %1252 = vmatpush1.msra.mxu0 0.0
        %1253 = vmatprep.subr.mxu0 0.0
        %1254 = vmatpush1.msra.mxu0 0.0
        %1255 = vmatprep.subr.mxu0 0.0
        %1256 = vmatpush1.msra.mxu0 0.0
        %1257 = vmatprep.subr.mxu0 0.0
        %1258 = vmatpush1.msra.mxu0 0.0
        %1259 = vmatprep.subr.mxu0 0.0
        %1260 = vmatpush1.msra.mxu0 0.0
        %1261 = vmatprep.subr.mxu0 0.0
        %1262 = vmatpush1.msra.mxu0 0.0
        %1263 = vmatprep.subr.mxu0 0.0
        %1264 = vmatpush1.msra.mxu0 0.0
        %1265 = vmatprep.mubr.f32.mxu0 0.0
        %1266 = vmatmul.mubr.f32.gmra.mrb[0].mxu0 %v1122
        %v1267 = vpop.f32.mrb[0].mxu0
        %v1268 = vadd.f32 0.0, %v1267
        %v1269 = vpop.f32.mrb[0].mxu0
        %1270 = vdwg.mxu0
        %v1271 = vadd.f32 %v1036, %v1197
        %v1272 = vadd.f32 %v1038, %v1199
        %v1273 = vadd.f32 %v1107, %v1268
        %v1274 = vadd.f32 %v785, %v1271
        %v1275 = vadd.f32 %v786, %v1272
        %v1276 = vadd.f32 %v787, %v1273
        %s1277 = scalar_lea.vmem %s1, 16
        %v1278 = vld [vmem:[%s1277] sm:$0xff]
        %s1279 = scalar_lea.vmem %s1, 40
        %v1280 = vld [vmem:[%s1279] sm:$0xff]
        %1281 = vrot.lane.b32.xlu0 %v279, 110
        %v1282 = vpop.permute.xlu0 %1281
        %1283 = vrot.lane.b32.xlu0 %v287, 110
        %v1284 = vpop.permute.xlu0 %1283
        %1285 = vrot.lane.b32.xlu0 %v280, 110
        %v1286 = vpop.permute.xlu0 %1285
        %vm1287 = vcmask 900096
        %v1288 = vsel %vm1287, %v1282, %v1284
        %v1289 = vsel %vm1287, %v1284, %v1286
        %v1291 = vsel %vm297, %v1280, 0
        %v1293 = vsel %vm301, %v1288, 0
        %v1295 = vsel %vm301, %v1289, 0
        %v1297 = vsel %vm301, %v1286, 0
        %1299 = vmatprep.subr.mxu0 %v1295
        %1300 = vmatpush1.msra.mxu0 %v1293
        %1301 = vmatprep.subr.mxu0 0.0
        %1302 = vmatpush1.msra.mxu0 0.0
        %1303 = vmatprep.subr.mxu0 0.0
        %1304 = vmatpush1.msra.mxu0 0.0
        %1305 = vmatprep.subr.mxu0 0.0
        %1306 = vmatpush1.msra.mxu0 0.0
        %1307 = vmatprep.subr.mxu0 0.0
        %1308 = vmatpush1.msra.mxu0 0.0
        %1309 = vmatprep.subr.mxu0 0.0
        %1310 = vmatpush1.msra.mxu0 0.0
        %1311 = vmatprep.subr.mxu0 0.0
        %1312 = vmatpush1.msra.mxu0 0.0
        %1313 = vmatprep.subr.mxu0 0.0
        %1314 = vmatpush1.msra.mxu0 0.0
        %1315 = vmatprep.subr.mxu0 0.0
        %1316 = vmatpush1.msra.mxu0 0.0
        %1317 = vmatprep.subr.mxu0 0.0
        %1318 = vmatpush1.msra.mxu0 0.0
        %1319 = vmatprep.subr.mxu0 0.0
        %1320 = vmatpush1.msra.mxu0 0.0
        %1321 = vmatprep.subr.mxu0 0.0
        %1322 = vmatpush1.msra.mxu0 0.0
        %1323 = vmatprep.subr.mxu0 0.0
        %1324 = vmatpush1.msra.mxu0 0.0
        %1325 = vmatprep.subr.mxu0 0.0
        %1326 = vmatpush1.msra.mxu0 0.0
        %1327 = vmatprep.subr.mxu0 0.0
        %1328 = vmatpush1.msra.mxu0 0.0
        %1329 = vmatprep.subr.mxu0 0.0
        %1330 = vmatpush1.msra.mxu0 0.0
        %1331 = vmatprep.subr.mxu0 0.0
        %1332 = vmatpush1.msra.mxu0 0.0
        %1333 = vmatprep.subr.mxu0 0.0
        %1334 = vmatpush1.msra.mxu0 0.0
        %1335 = vmatprep.subr.mxu0 0.0
        %1336 = vmatpush1.msra.mxu0 0.0
        %1337 = vmatprep.subr.mxu0 0.0
        %1338 = vmatpush1.msra.mxu0 0.0
        %1339 = vmatprep.subr.mxu0 0.0
        %1340 = vmatpush1.msra.mxu0 0.0
        %1341 = vmatprep.subr.mxu0 0.0
        %1342 = vmatpush1.msra.mxu0 0.0
        %1343 = vmatprep.subr.mxu0 0.0
        %1344 = vmatpush1.msra.mxu0 0.0
        %1345 = vmatprep.subr.mxu0 0.0
        %1346 = vmatpush1.msra.mxu0 0.0
        %1347 = vmatprep.subr.mxu0 0.0
        %1348 = vmatpush1.msra.mxu0 0.0
        %1349 = vmatprep.subr.mxu0 0.0
        %1350 = vmatpush1.msra.mxu0 0.0
        %1351 = vmatprep.subr.mxu0 0.0
        %1352 = vmatpush1.msra.mxu0 0.0
        %1353 = vmatprep.subr.mxu0 0.0
        %1354 = vmatpush1.msra.mxu0 0.0
        %1355 = vmatprep.subr.mxu0 0.0
        %1356 = vmatpush1.msra.mxu0 0.0
        %1357 = vmatprep.subr.mxu0 0.0
        %1358 = vmatpush1.msra.mxu0 0.0
        %1359 = vmatprep.subr.mxu0 0.0
        %1360 = vmatpush1.msra.mxu0 0.0
        %1361 = vmatprep.subr.mxu0 0.0
        %1362 = vmatpush1.msra.mxu0 0.0
        %1363 = vmatprep.mubr.f32.mxu0 0.0
        %1364 = vmatmul.mubr.f32.gmra.mrb[0].mxu0 %v1291
        %v1365 = vpop.f32.mrb[0].mxu0
        %v1366 = vadd.f32 0.0, %v1365
        %v1367 = vpop.f32.mrb[0].mxu0
        %v1368 = vadd.f32 0.0, %v1367
        %1369 = vdwg.mxu0
        %1370 = vmatprep.subr.mxu0 0.0
        %1371 = vmatpush1.msra.mxu0 %v1297
        %1372 = vmatprep.subr.mxu0 0.0
        %1373 = vmatpush1.msra.mxu0 0.0
        %1374 = vmatprep.subr.mxu0 0.0
        %1375 = vmatpush1.msra.mxu0 0.0
        %1376 = vmatprep.subr.mxu0 0.0
        %1377 = vmatpush1.msra.mxu0 0.0
        %1378 = vmatprep.subr.mxu0 0.0
        %1379 = vmatpush1.msra.mxu0 0.0
        %1380 = vmatprep.subr.mxu0 0.0
        %1381 = vmatpush1.msra.mxu0 0.0
        %1382 = vmatprep.subr.mxu0 0.0
        %1383 = vmatpush1.msra.mxu0 0.0
        %1384 = vmatprep.subr.mxu0 0.0
        %1385 = vmatpush1.msra.mxu0 0.0
        %1386 = vmatprep.subr.mxu0 0.0
        %1387 = vmatpush1.msra.mxu0 0.0
        %1388 = vmatprep.subr.mxu0 0.0
        %1389 = vmatpush1.msra.mxu0 0.0
        %1390 = vmatprep.subr.mxu0 0.0
        %1391 = vmatpush1.msra.mxu0 0.0
        %1392 = vmatprep.subr.mxu0 0.0
        %1393 = vmatpush1.msra.mxu0 0.0
        %1394 = vmatprep.subr.mxu0 0.0
        %1395 = vmatpush1.msra.mxu0 0.0
        %1396 = vmatprep.subr.mxu0 0.0
        %1397 = vmatpush1.msra.mxu0 0.0
        %1398 = vmatprep.subr.mxu0 0.0
        %1399 = vmatpush1.msra.mxu0 0.0
        %1400 = vmatprep.subr.mxu0 0.0
        %1401 = vmatpush1.msra.mxu0 0.0
        %1402 = vmatprep.subr.mxu0 0.0
        %1403 = vmatpush1.msra.mxu0 0.0
        %1404 = vmatprep.subr.mxu0 0.0
        %1405 = vmatpush1.msra.mxu0 0.0
        %1406 = vmatprep.subr.mxu0 0.0
        %1407 = vmatpush1.msra.mxu0 0.0
        %1408 = vmatprep.subr.mxu0 0.0
        %1409 = vmatpush1.msra.mxu0 0.0
        %1410 = vmatprep.subr.mxu0 0.0
        %1411 = vmatpush1.msra.mxu0 0.0
        %1412 = vmatprep.subr.mxu0 0.0
        %1413 = vmatpush1.msra.mxu0 0.0
        %1414 = vmatprep.subr.mxu0 0.0
        %1415 = vmatpush1.msra.mxu0 0.0
        %1416 = vmatprep.subr.mxu0 0.0
        %1417 = vmatpush1.msra.mxu0 0.0
        %1418 = vmatprep.subr.mxu0 0.0
        %1419 = vmatpush1.msra.mxu0 0.0
        %1420 = vmatprep.subr.mxu0 0.0
        %1421 = vmatpush1.msra.mxu0 0.0
        %1422 = vmatprep.subr.mxu0 0.0
        %1423 = vmatpush1.msra.mxu0 0.0
        %1424 = vmatprep.subr.mxu0 0.0
        %1425 = vmatpush1.msra.mxu0 0.0
        %1426 = vmatprep.subr.mxu0 0.0
        %1427 = vmatpush1.msra.mxu0 0.0
        %1428 = vmatprep.subr.mxu0 0.0
        %1429 = vmatpush1.msra.mxu0 0.0
        %1430 = vmatprep.subr.mxu0 0.0
        %1431 = vmatpush1.msra.mxu0 0.0
        %1432 = vmatprep.subr.mxu0 0.0
        %1433 = vmatpush1.msra.mxu0 0.0
        %1434 = vmatprep.mubr.f32.mxu0 0.0
        %1435 = vmatmul.mubr.f32.gmra.mrb[0].mxu0 %v1291
        %v1436 = vpop.f32.mrb[0].mxu0
        %v1437 = vadd.f32 0.0, %v1436
        %v1438 = vpop.f32.mrb[0].mxu0
        %1439 = vdwg.mxu0
        %1440 = vrot.lane.b32.xlu0 %v279, 126
        %v1441 = vpop.permute.xlu0 %1440
        %1442 = vrot.lane.b32.xlu0 %v287, 126
        %v1443 = vpop.permute.xlu0 %1442
        %1444 = vrot.lane.b32.xlu0 %v280, 126
        %v1445 = vpop.permute.xlu0 %1444
        %vm1446 = vcmask 1031168
        %v1447 = vsel %vm1446, %v1441, %v1443
        %v1448 = vsel %vm1446, %v1443, %v1445
        %v1450 = vsel %vm297, %v1278, 0
        %v1452 = vsel %vm301, %v1447, 0
        %v1454 = vsel %vm301, %v1448, 0
        %v1456 = vsel %vm301, %v1445, 0
        %1458 = vmatprep.subr.mxu0 %v1454
        %1459 = vmatpush1.msra.mxu0 %v1452
        %1460 = vmatprep.subr.mxu0 0.0
        %1461 = vmatpush1.msra.mxu0 0.0
        %1462 = vmatprep.subr.mxu0 0.0
        %1463 = vmatpush1.msra.mxu0 0.0
        %1464 = vmatprep.subr.mxu0 0.0
        %1465 = vmatpush1.msra.mxu0 0.0
        %1466 = vmatprep.subr.mxu0 0.0
        %1467 = vmatpush1.msra.mxu0 0.0
        %1468 = vmatprep.subr.mxu0 0.0
        %1469 = vmatpush1.msra.mxu0 0.0
        %1470 = vmatprep.subr.mxu0 0.0
        %1471 = vmatpush1.msra.mxu0 0.0
        %1472 = vmatprep.subr.mxu0 0.0
        %1473 = vmatpush1.msra.mxu0 0.0
        %1474 = vmatprep.subr.mxu0 0.0
        %1475 = vmatpush1.msra.mxu0 0.0
        %1476 = vmatprep.subr.mxu0 0.0
        %1477 = vmatpush1.msra.mxu0 0.0
        %1478 = vmatprep.subr.mxu0 0.0
        %1479 = vmatpush1.msra.mxu0 0.0
        %1480 = vmatprep.subr.mxu0 0.0
        %1481 = vmatpush1.msra.mxu0 0.0
        %1482 = vmatprep.subr.mxu0 0.0
        %1483 = vmatpush1.msra.mxu0 0.0
        %1484 = vmatprep.subr.mxu0 0.0
        %1485 = vmatpush1.msra.mxu0 0.0
        %1486 = vmatprep.subr.mxu0 0.0
        %1487 = vmatpush1.msra.mxu0 0.0
        %1488 = vmatprep.subr.mxu0 0.0
        %1489 = vmatpush1.msra.mxu0 0.0
        %1490 = vmatprep.subr.mxu0 0.0
        %1491 = vmatpush1.msra.mxu0 0.0
        %1492 = vmatprep.subr.mxu0 0.0
        %1493 = vmatpush1.msra.mxu0 0.0
        %1494 = vmatprep.subr.mxu0 0.0
        %1495 = vmatpush1.msra.mxu0 0.0
        %1496 = vmatprep.subr.mxu0 0.0
        %1497 = vmatpush1.msra.mxu0 0.0
        %1498 = vmatprep.subr.mxu0 0.0
        %1499 = vmatpush1.msra.mxu0 0.0
        %1500 = vmatprep.subr.mxu0 0.0
        %1501 = vmatpush1.msra.mxu0 0.0
        %1502 = vmatprep.subr.mxu0 0.0
        %1503 = vmatpush1.msra.mxu0 0.0
        %1504 = vmatprep.subr.mxu0 0.0
        %1505 = vmatpush1.msra.mxu0 0.0
        %1506 = vmatprep.subr.mxu0 0.0
        %1507 = vmatpush1.msra.mxu0 0.0
        %1508 = vmatprep.subr.mxu0 0.0
        %1509 = vmatpush1.msra.mxu0 0.0
        %1510 = vmatprep.subr.mxu0 0.0
        %1511 = vmatpush1.msra.mxu0 0.0
        %1512 = vmatprep.subr.mxu0 0.0
        %1513 = vmatpush1.msra.mxu0 0.0
        %1514 = vmatprep.subr.mxu0 0.0
        %1515 = vmatpush1.msra.mxu0 0.0
        %1516 = vmatprep.subr.mxu0 0.0
        %1517 = vmatpush1.msra.mxu0 0.0
        %1518 = vmatprep.subr.mxu0 0.0
        %1519 = vmatpush1.msra.mxu0 0.0
        %1520 = vmatprep.subr.mxu0 0.0
        %1521 = vmatpush1.msra.mxu0 0.0
        %1522 = vmatprep.mubr.f32.mxu0 0.0
        %1523 = vmatmul.mubr.f32.gmra.mrb[0].mxu0 %v1450
        %v1524 = vpop.f32.mrb[0].mxu0
        %v1525 = vadd.f32 %v1366, %v1524
        %v1526 = vpop.f32.mrb[0].mxu0
        %v1527 = vadd.f32 %v1368, %v1526
        %1528 = vdwg.mxu0
        %1529 = vmatprep.subr.mxu0 0.0
        %1530 = vmatpush1.msra.mxu0 %v1456
        %1531 = vmatprep.subr.mxu0 0.0
        %1532 = vmatpush1.msra.mxu0 0.0
        %1533 = vmatprep.subr.mxu0 0.0
        %1534 = vmatpush1.msra.mxu0 0.0
        %1535 = vmatprep.subr.mxu0 0.0
        %1536 = vmatpush1.msra.mxu0 0.0
        %1537 = vmatprep.subr.mxu0 0.0
        %1538 = vmatpush1.msra.mxu0 0.0
        %1539 = vmatprep.subr.mxu0 0.0
        %1540 = vmatpush1.msra.mxu0 0.0
        %1541 = vmatprep.subr.mxu0 0.0
        %1542 = vmatpush1.msra.mxu0 0.0
        %1543 = vmatprep.subr.mxu0 0.0
        %1544 = vmatpush1.msra.mxu0 0.0
        %1545 = vmatprep.subr.mxu0 0.0
        %1546 = vmatpush1.msra.mxu0 0.0
        %1547 = vmatprep.subr.mxu0 0.0
        %1548 = vmatpush1.msra.mxu0 0.0
        %1549 = vmatprep.subr.mxu0 0.0
        %1550 = vmatpush1.msra.mxu0 0.0
        %1551 = vmatprep.subr.mxu0 0.0
        %1552 = vmatpush1.msra.mxu0 0.0
        %1553 = vmatprep.subr.mxu0 0.0
        %1554 = vmatpush1.msra.mxu0 0.0
        %1555 = vmatprep.subr.mxu0 0.0
        %1556 = vmatpush1.msra.mxu0 0.0
        %1557 = vmatprep.subr.mxu0 0.0
        %1558 = vmatpush1.msra.mxu0 0.0
        %1559 = vmatprep.subr.mxu0 0.0
        %1560 = vmatpush1.msra.mxu0 0.0
        %1561 = vmatprep.subr.mxu0 0.0
        %1562 = vmatpush1.msra.mxu0 0.0
        %1563 = vmatprep.subr.mxu0 0.0
        %1564 = vmatpush1.msra.mxu0 0.0
        %1565 = vmatprep.subr.mxu0 0.0
        %1566 = vmatpush1.msra.mxu0 0.0
        %1567 = vmatprep.subr.mxu0 0.0
        %1568 = vmatpush1.msra.mxu0 0.0
        %1569 = vmatprep.subr.mxu0 0.0
        %1570 = vmatpush1.msra.mxu0 0.0
        %1571 = vmatprep.subr.mxu0 0.0
        %1572 = vmatpush1.msra.mxu0 0.0
        %1573 = vmatprep.subr.mxu0 0.0
        %1574 = vmatpush1.msra.mxu0 0.0
        %1575 = vmatprep.subr.mxu0 0.0
        %1576 = vmatpush1.msra.mxu0 0.0
        %1577 = vmatprep.subr.mxu0 0.0
        %1578 = vmatpush1.msra.mxu0 0.0
        %1579 = vmatprep.subr.mxu0 0.0
        %1580 = vmatpush1.msra.mxu0 0.0
        %1581 = vmatprep.subr.mxu0 0.0
        %1582 = vmatpush1.msra.mxu0 0.0
        %1583 = vmatprep.subr.mxu0 0.0
        %1584 = vmatpush1.msra.mxu0 0.0
        %1585 = vmatprep.subr.mxu0 0.0
        %1586 = vmatpush1.msra.mxu0 0.0
        %1587 = vmatprep.subr.mxu0 0.0
        %1588 = vmatpush1.msra.mxu0 0.0
        %1589 = vmatprep.subr.mxu0 0.0
        %1590 = vmatpush1.msra.mxu0 0.0
        %1591 = vmatprep.subr.mxu0 0.0
        %1592 = vmatpush1.msra.mxu0 0.0
        %1593 = vmatprep.mubr.f32.mxu0 0.0
        %1594 = vmatmul.mubr.f32.gmra.mrb[0].mxu0 %v1450
        %v1595 = vpop.f32.mrb[0].mxu0
        %v1596 = vadd.f32 %v1437, %v1595
        %v1597 = vpop.f32.mrb[0].mxu0
        %1598 = vdwg.mxu0
        %s1599 = scalar_lea.vmem %s1, 64
        %v1600 = vld [vmem:[%s1599] sm:$0xff]
        %1601 = vrot.lane.b32.xlu0 %v279, 94
        %v1602 = vpop.permute.xlu0 %1601
        %1603 = vrot.lane.b32.xlu0 %v287, 94
        %v1604 = vpop.permute.xlu0 %1603
        %1605 = vrot.lane.b32.xlu0 %v280, 94
        %v1606 = vpop.permute.xlu0 %1605
        %vm1607 = vcmask 769024
        %v1608 = vsel %vm1607, %v1602, %v1604
        %v1609 = vsel %vm1607, %v1604, %v1606
        %v1611 = vsel %vm297, %v1600, 0
        %v1613 = vsel %vm301, %v1608, 0
        %v1615 = vsel %vm301, %v1609, 0
        %v1617 = vsel %vm301, %v1606, 0
        %1619 = vmatprep.subr.mxu0 %v1615
        %1620 = vmatpush1.msra.mxu0 %v1613
        %1621 = vmatprep.subr.mxu0 0.0
        %1622 = vmatpush1.msra.mxu0 0.0
        %1623 = vmatprep.subr.mxu0 0.0
        %1624 = vmatpush1.msra.mxu0 0.0
        %1625 = vmatprep.subr.mxu0 0.0
        %1626 = vmatpush1.msra.mxu0 0.0
        %1627 = vmatprep.subr.mxu0 0.0
        %1628 = vmatpush1.msra.mxu0 0.0
        %1629 = vmatprep.subr.mxu0 0.0
        %1630 = vmatpush1.msra.mxu0 0.0
        %1631 = vmatprep.subr.mxu0 0.0
        %1632 = vmatpush1.msra.mxu0 0.0
        %1633 = vmatprep.subr.mxu0 0.0
        %1634 = vmatpush1.msra.mxu0 0.0
        %1635 = vmatprep.subr.mxu0 0.0
        %1636 = vmatpush1.msra.mxu0 0.0
        %1637 = vmatprep.subr.mxu0 0.0
        %1638 = vmatpush1.msra.mxu0 0.0
        %1639 = vmatprep.subr.mxu0 0.0
        %1640 = vmatpush1.msra.mxu0 0.0
        %1641 = vmatprep.subr.mxu0 0.0
        %1642 = vmatpush1.msra.mxu0 0.0
        %1643 = vmatprep.subr.mxu0 0.0
        %1644 = vmatpush1.msra.mxu0 0.0
        %1645 = vmatprep.subr.mxu0 0.0
        %1646 = vmatpush1.msra.mxu0 0.0
        %1647 = vmatprep.subr.mxu0 0.0
        %1648 = vmatpush1.msra.mxu0 0.0
        %1649 = vmatprep.subr.mxu0 0.0
        %1650 = vmatpush1.msra.mxu0 0.0
        %1651 = vmatprep.subr.mxu0 0.0
        %1652 = vmatpush1.msra.mxu0 0.0
        %1653 = vmatprep.subr.mxu0 0.0
        %1654 = vmatpush1.msra.mxu0 0.0
        %1655 = vmatprep.subr.mxu0 0.0
        %1656 = vmatpush1.msra.mxu0 0.0
        %1657 = vmatprep.subr.mxu0 0.0
        %1658 = vmatpush1.msra.mxu0 0.0
        %1659 = vmatprep.subr.mxu0 0.0
        %1660 = vmatpush1.msra.mxu0 0.0
        %1661 = vmatprep.subr.mxu0 0.0
        %1662 = vmatpush1.msra.mxu0 0.0
        %1663 = vmatprep.subr.mxu0 0.0
        %1664 = vmatpush1.msra.mxu0 0.0
        %1665 = vmatprep.subr.mxu0 0.0
        %1666 = vmatpush1.msra.mxu0 0.0
        %1667 = vmatprep.subr.mxu0 0.0
        %1668 = vmatpush1.msra.mxu0 0.0
        %1669 = vmatprep.subr.mxu0 0.0
        %1670 = vmatpush1.msra.mxu0 0.0
        %1671 = vmatprep.subr.mxu0 0.0
        %1672 = vmatpush1.msra.mxu0 0.0
        %1673 = vmatprep.subr.mxu0 0.0
        %1674 = vmatpush1.msra.mxu0 0.0
        %1675 = vmatprep.subr.mxu0 0.0
        %1676 = vmatpush1.msra.mxu0 0.0
        %1677 = vmatprep.subr.mxu0 0.0
        %1678 = vmatpush1.msra.mxu0 0.0
        %1679 = vmatprep.subr.mxu0 0.0
        %1680 = vmatpush1.msra.mxu0 0.0
        %1681 = vmatprep.subr.mxu0 0.0
        %1682 = vmatpush1.msra.mxu0 0.0
        %1683 = vmatprep.mubr.f32.mxu0 0.0
        %1684 = vmatmul.mubr.f32.gmra.mrb[0].mxu0 %v1611
        %v1685 = vpop.f32.mrb[0].mxu0
        %v1686 = vadd.f32 0.0, %v1685
        %v1687 = vpop.f32.mrb[0].mxu0
        %v1688 = vadd.f32 0.0, %v1687
        %1689 = vdwg.mxu0
        %1690 = vmatprep.subr.mxu0 0.0
        %1691 = vmatpush1.msra.mxu0 %v1617
        %1692 = vmatprep.subr.mxu0 0.0
        %1693 = vmatpush1.msra.mxu0 0.0
        %1694 = vmatprep.subr.mxu0 0.0
        %1695 = vmatpush1.msra.mxu0 0.0
        %1696 = vmatprep.subr.mxu0 0.0
        %1697 = vmatpush1.msra.mxu0 0.0
        %1698 = vmatprep.subr.mxu0 0.0
        %1699 = vmatpush1.msra.mxu0 0.0
        %1700 = vmatprep.subr.mxu0 0.0
        %1701 = vmatpush1.msra.mxu0 0.0
        %1702 = vmatprep.subr.mxu0 0.0
        %1703 = vmatpush1.msra.mxu0 0.0
        %1704 = vmatprep.subr.mxu0 0.0
        %1705 = vmatpush1.msra.mxu0 0.0
        %1706 = vmatprep.subr.mxu0 0.0
        %1707 = vmatpush1.msra.mxu0 0.0
        %1708 = vmatprep.subr.mxu0 0.0
        %1709 = vmatpush1.msra.mxu0 0.0
        %1710 = vmatprep.subr.mxu0 0.0
        %1711 = vmatpush1.msra.mxu0 0.0
        %1712 = vmatprep.subr.mxu0 0.0
        %1713 = vmatpush1.msra.mxu0 0.0
        %1714 = vmatprep.subr.mxu0 0.0
        %1715 = vmatpush1.msra.mxu0 0.0
        %1716 = vmatprep.subr.mxu0 0.0
        %1717 = vmatpush1.msra.mxu0 0.0
        %1718 = vmatprep.subr.mxu0 0.0
        %1719 = vmatpush1.msra.mxu0 0.0
        %1720 = vmatprep.subr.mxu0 0.0
        %1721 = vmatpush1.msra.mxu0 0.0
        %1722 = vmatprep.subr.mxu0 0.0
        %1723 = vmatpush1.msra.mxu0 0.0
        %1724 = vmatprep.subr.mxu0 0.0
        %1725 = vmatpush1.msra.mxu0 0.0
        %1726 = vmatprep.subr.mxu0 0.0
        %1727 = vmatpush1.msra.mxu0 0.0
        %1728 = vmatprep.subr.mxu0 0.0
        %1729 = vmatpush1.msra.mxu0 0.0
        %1730 = vmatprep.subr.mxu0 0.0
        %1731 = vmatpush1.msra.mxu0 0.0
        %1732 = vmatprep.subr.mxu0 0.0
        %1733 = vmatpush1.msra.mxu0 0.0
        %1734 = vmatprep.subr.mxu0 0.0
        %1735 = vmatpush1.msra.mxu0 0.0
        %1736 = vmatprep.subr.mxu0 0.0
        %1737 = vmatpush1.msra.mxu0 0.0
        %1738 = vmatprep.subr.mxu0 0.0
        %1739 = vmatpush1.msra.mxu0 0.0
        %1740 = vmatprep.subr.mxu0 0.0
        %1741 = vmatpush1.msra.mxu0 0.0
        %1742 = vmatprep.subr.mxu0 0.0
        %1743 = vmatpush1.msra.mxu0 0.0
        %1744 = vmatprep.subr.mxu0 0.0
        %1745 = vmatpush1.msra.mxu0 0.0
        %1746 = vmatprep.subr.mxu0 0.0
        %1747 = vmatpush1.msra.mxu0 0.0
        %1748 = vmatprep.subr.mxu0 0.0
        %1749 = vmatpush1.msra.mxu0 0.0
        %1750 = vmatprep.subr.mxu0 0.0
        %1751 = vmatpush1.msra.mxu0 0.0
        %1752 = vmatprep.subr.mxu0 0.0
        %1753 = vmatpush1.msra.mxu0 0.0
        %1754 = vmatprep.mubr.f32.mxu0 0.0
        %1755 = vmatmul.mubr.f32.gmra.mrb[0].mxu0 %v1611
        %v1756 = vpop.f32.mrb[0].mxu0
        %v1757 = vadd.f32 0.0, %v1756
        %v1758 = vpop.f32.mrb[0].mxu0
        %1759 = vdwg.mxu0
        %v1760 = vadd.f32 %v1525, %v1686
        %v1761 = vadd.f32 %v1527, %v1688
        %v1762 = vadd.f32 %v1596, %v1757
        %vm1763 = vcmp.ge.s32.totalorder %v281, 0
        %vm1764 = vcmp.lt.s32.totalorder %v281, 15
        %vm1765 = vmand %vm1763, %vm1764
        %v1766 = vsel %vm1765, 1, 0
        %v1767 = vlaneseq
        %v1768 = vshrl.u32 %v1767, 7
        %v1769 = vsub.s32 0, %v1768
        %v1770 = vrot.slane %v1766, %v1769
        %v1771 = vlaneseq
        %v1772 = vshrl.u32 %v1771, 7
        %v1773 = vsub.s32 1, %v1772
        %v1774 = vrot.slane %v1766, %v1773
        %v1775 = vlaneseq
        %v1776 = vshrl.u32 %v1775, 7
        %v1777 = vsub.s32 2, %v1776
        %v1778 = vrot.slane %v1766, %v1777
        %vm1779 = vcmp.eq.s32.totalorder %v1770, 1
        %vm1780 = vcmp.eq.s32.totalorder %v1774, 1
        %vm1781 = vcmp.eq.s32.totalorder %v1778, 1
        %v1782 = vsel %vm1779, %v1760, 0.0
        %v1783 = vsel %vm1780, %v1761, 0.0
        %v1784 = vsel %vm1781, %v1762, 0.0
        %v1785 = vadd.f32 %v1274, %v1782
        %v1786 = vadd.f32 %v1275, %v1783
        %v1787 = vadd.f32 %v1276, %v1784
        %v1788 = vld [vmem:[%s2] sm:$0xff]
        %1790 = vset.pattern.permute.xlu0 0
        %1791 = vperm.xlu0 %1790, %v1788
        %v1792 = vpop.permute.xlu0 %1791
        %v1794 = vadd.f32 %v1785, %v1792
        %v1795 = vadd.f32 %v1786, %v1792
        %v1796 = vadd.f32 %v1787, %v1792
        %v1797 = vmax.f32 %v1794, 0.0
        %v1798 = vmax.f32 %v1795, 0.0
        %v1799 = vmax.f32 %v1796, 0.0
        %v1800 = vlaneseq
        %v1801 = vand.u32 %v1800, 127
        %v1802 = vadd.s32 %v1801, 128
        %v1803 = vadd.s32 %v1801, 256
        %s1804 = smul.u32 %s25, 16
        %s1805 = ssub.s32 1, %s1804
        %s1806 = smul.u32 %s1805, 16
        %s1807 = ssub.s32 17, %s1804
        %s1808 = smul.u32 %s1807, 16
        %v1809 = vstv %s1806
        %vm1810 = vcmp.ge.s32.totalorder %v1801, %v1809
        %vm1811 = vcmp.ge.s32.totalorder %v1802, %v1809
        %vm1812 = vcmp.ge.s32.totalorder %v1803, %v1809
        %v1813 = vstv %s1808
        %vm1814 = vcmp.lt.s32.totalorder %v1801, %v1813
        %vm1815 = vcmp.lt.s32.totalorder %v1802, %v1813
        %vm1816 = vcmp.lt.s32.totalorder %v1803, %v1813
        %vm1817 = vmand %vm1810, %vm1814
        %vm1818 = vmand %vm1811, %vm1815
        %vm1819 = vmand %vm1812, %vm1816
        %v1820 = vsel %vm1817, 1, 0
        %v1821 = vsel %vm1818, 1, 0
        %v1822 = vsel %vm1819, 1, 0
        %vm1823 = vcmp.eq.s32.totalorder %v1820, 1
        %vm1824 = vcmp.eq.s32.totalorder %v1821, 1
        %vm1825 = vcmp.eq.s32.totalorder %v1822, 1
        %v1826 = vsel %vm1823, %v1797, 0.0
        %v1827 = vsel %vm1824, %v1798, 0.0
        %v1828 = vsel %vm1825, %v1799, 0.0
        %1832 = vrot.lane.b32.xlu0 %v1826, 1
        %v1833 = vpop.permute.xlu0 %1832
        %1834 = vrot.lane.b32.xlu0 %v1827, 1
        %v1835 = vpop.permute.xlu0 %1834
        %1836 = vrot.lane.b32.xlu0 %v1828, 1
        %v1837 = vpop.permute.xlu0 %1836
        %vm1838 = vcmask 7168
        %v1839 = vsel %vm1838, %v1833, %v1835
        %v1840 = vsel %vm1838, %v1835, %v1837
        %v1844 = vsel %vm1838, 0.0, %v1833
        %vm1845 = vcmask 269312
        %v1846 = vsel %vm1845, %v1840, 0.0
        %v1847 = vld [vmem:[%s3] sm:$0xff]
        %1849 = vset.pattern.permute.xlu0 0
        %1850 = vperm.xlu0 %1849, %v1847
        %v1851 = vpop.permute.xlu0 %1850
        %v1853 = vmul.f32 %v1844, %v1851
        %v1854 = vmul.f32 %v1839, %v1851
        %v1855 = vadd.f32 %v1853, 0.0
        %v1856 = vadd.f32 %v1854, 0.0
        %s1857 = scalar_lea.vmem %s3, 24
        %v1858 = vld [vmem:[%s1857] sm:$0xff]
        %1860 = vset.pattern.permute.xlu0 0
        %1861 = vperm.xlu0 %1860, %v1858
        %v1862 = vpop.permute.xlu0 %1861
        %v1864 = vmul.f32 %v1844, %v1862
        %v1865 = vmul.f32 %v1839, %v1862
        %v1866 = vmul.f32 %v1846, %v1862
        %1870 = vrot.lane.b32.xlu0 %v1864, 112
        %v1871 = vpop.permute.xlu0 %1870
        %1872 = vrot.lane.b32.xlu0 %v1865, 112
        %v1873 = vpop.permute.xlu0 %1872
        %1874 = vrot.lane.b32.xlu0 %v1866, 112
        %v1875 = vpop.permute.xlu0 %1874
        %v1876 = vsel %vm294, %v1871, %v1873
        %v1877 = vsel %vm294, %v1873, %v1875
        %v1880 = vadd.f32 %v1855, %v1876
        %v1881 = vadd.f32 %v1856, %v1877
        %s1882 = scalar_lea.vmem %s3, 48
        %v1883 = vld [vmem:[%s1882] sm:$0xff]
        %1885 = vset.pattern.permute.xlu0 0
        %1886 = vperm.xlu0 %1885, %v1883
        %v1887 = vpop.permute.xlu0 %1886
        %v1889 = vmul.f32 %v1844, %v1887
        %v1890 = vmul.f32 %v1839, %v1887
        %v1891 = vmul.f32 %v1846, %v1887
        %1895 = vrot.lane.b32.xlu0 %v1889, 96
        %v1896 = vpop.permute.xlu0 %1895
        %1897 = vrot.lane.b32.xlu0 %v1890, 96
        %v1898 = vpop.permute.xlu0 %1897
        %1899 = vrot.lane.b32.xlu0 %v1891, 96
        %v1900 = vpop.permute.xlu0 %1899
        %v1901 = vsel %vm607, %v1896, %v1898
        %v1902 = vsel %vm607, %v1898, %v1900
        %v1905 = vadd.f32 %v1880, %v1901
        %v1906 = vadd.f32 %v1881, %v1902
        %1909 = vrot.lane.b32.xlu0 %v1905, 16
        %v1910 = vpop.permute.xlu0 %1909
        %1911 = vrot.lane.b32.xlu0 %v1906, 16
        %v1912 = vpop.permute.xlu0 %1911
        %vm1913 = vcmask 130048
        %v1914 = vsel %vm1913, %v1910, %v1912
        %v1918 = vsel %vm779, %v1910, 0.0
        %v1919 = vsel %vm780, %v1914, 0.0
        %v1920 = vsel %vm781, %v1912, 0.0
        %v1921 = vadd.f32 %v1918, 0.0
        %v1922 = vadd.f32 %v1919, 0.0
        %v1923 = vadd.f32 %v1920, 0.0
        %s1924 = scalar_lea.vmem %s3, 8
        %v1925 = vld [vmem:[%s1924] sm:$0xff]
        %1927 = vset.pattern.permute.xlu0 0
        %1928 = vperm.xlu0 %1927, %v1925
        %v1929 = vpop.permute.xlu0 %1928
        %v1931 = vmul.f32 %v1844, %v1929
        %v1932 = vmul.f32 %v1839, %v1929
        %v1933 = vmul.f32 %v1846, %v1929
        %v1934 = vadd.f32 %v1931, 0.0
        %v1935 = vadd.f32 %v1932, 0.0
        %v1936 = vadd.f32 %v1933, 0.0
        %s1937 = scalar_lea.vmem %s3, 32
        %v1938 = vld [vmem:[%s1937] sm:$0xff]
        %1940 = vset.pattern.permute.xlu0 0
        %1941 = vperm.xlu0 %1940, %v1938
        %v1942 = vpop.permute.xlu0 %1941
        %v1944 = vmul.f32 %v1844, %v1942
        %v1945 = vmul.f32 %v1839, %v1942
        %v1946 = vmul.f32 %v1846, %v1942
        %1950 = vrot.lane.b32.xlu0 %v1944, 112
        %v1951 = vpop.permute.xlu0 %1950
        %1952 = vrot.lane.b32.xlu0 %v1945, 112
        %v1953 = vpop.permute.xlu0 %1952
        %1954 = vrot.lane.b32.xlu0 %v1946, 112
        %v1955 = vpop.permute.xlu0 %1954
        %v1956 = vsel %vm294, %v1951, %v1953
        %v1957 = vsel %vm294, %v1953, %v1955
        %v1961 = vadd.f32 %v1934, %v1956
        %v1962 = vadd.f32 %v1935, %v1957
        %v1963 = vadd.f32 %v1936, %v1955
        %s1964 = scalar_lea.vmem %s3, 56
        %v1965 = vld [vmem:[%s1964] sm:$0xff]
        %1967 = vset.pattern.permute.xlu0 0
        %1968 = vperm.xlu0 %1967, %v1965
        %v1969 = vpop.permute.xlu0 %1968
        %v1971 = vmul.f32 %v1844, %v1969
        %v1972 = vmul.f32 %v1839, %v1969
        %v1973 = vmul.f32 %v1846, %v1969
        %1977 = vrot.lane.b32.xlu0 %v1971, 96
        %v1978 = vpop.permute.xlu0 %1977
        %1979 = vrot.lane.b32.xlu0 %v1972, 96
        %v1980 = vpop.permute.xlu0 %1979
        %1981 = vrot.lane.b32.xlu0 %v1973, 96
        %v1982 = vpop.permute.xlu0 %1981
        %v1983 = vsel %vm607, %v1978, %v1980
        %v1984 = vsel %vm607, %v1980, %v1982
        %v1988 = vadd.f32 %v1961, %v1983
        %v1989 = vadd.f32 %v1962, %v1984
        %v1990 = vadd.f32 %v1963, %v1982
        %1994 = vrot.lane.b32.xlu0 %v1988, 15
        %v1995 = vpop.permute.xlu0 %1994
        %1996 = vrot.lane.b32.xlu0 %v1989, 15
        %v1997 = vpop.permute.xlu0 %1996
        %1998 = vrot.lane.b32.xlu0 %v1990, 15
        %v1999 = vpop.permute.xlu0 %1998
        %vm2000 = vcmask 121856
        %v2001 = vsel %vm2000, %v1995, %v1997
        %v2002 = vsel %vm2000, %v1997, %v1999
        %v2006 = vadd.f32 %v1921, %v1995
        %v2007 = vadd.f32 %v1922, %v2001
        %v2008 = vadd.f32 %v1923, %v2002
        %s2009 = scalar_lea.vmem %s3, 16
        %v2010 = vld [vmem:[%s2009] sm:$0xff]
        %2012 = vset.pattern.permute.xlu0 0
        %2013 = vperm.xlu0 %2012, %v2010
        %v2014 = vpop.permute.xlu0 %2013
        %v2016 = vmul.f32 %v1844, %v2014
        %v2017 = vmul.f32 %v1839, %v2014
        %v2018 = vmul.f32 %v1846, %v2014
        %v2019 = vadd.f32 %v2016, 0.0
        %v2020 = vadd.f32 %v2017, 0.0
        %v2021 = vadd.f32 %v2018, 0.0
        %s2022 = scalar_lea.vmem %s3, 40
        %v2023 = vld [vmem:[%s2022] sm:$0xff]
        %2025 = vset.pattern.permute.xlu0 0
        %2026 = vperm.xlu0 %2025, %v2023
        %v2027 = vpop.permute.xlu0 %2026
        %v2029 = vmul.f32 %v1844, %v2027
        %v2030 = vmul.f32 %v1839, %v2027
        %v2031 = vmul.f32 %v1846, %v2027
        %2035 = vrot.lane.b32.xlu0 %v2029, 112
        %v2036 = vpop.permute.xlu0 %2035
        %2037 = vrot.lane.b32.xlu0 %v2030, 112
        %v2038 = vpop.permute.xlu0 %2037
        %2039 = vrot.lane.b32.xlu0 %v2031, 112
        %v2040 = vpop.permute.xlu0 %2039
        %v2041 = vsel %vm294, %v2036, %v2038
        %v2042 = vsel %vm294, %v2038, %v2040
        %v2046 = vadd.f32 %v2019, %v2041
        %v2047 = vadd.f32 %v2020, %v2042
        %v2048 = vadd.f32 %v2021, %v2040
        %s2049 = scalar_lea.vmem %s3, 64
        %v2050 = vld [vmem:[%s2049] sm:$0xff]
        %2052 = vset.pattern.permute.xlu0 0
        %2053 = vperm.xlu0 %2052, %v2050
        %v2054 = vpop.permute.xlu0 %2053
        %v2056 = vmul.f32 %v1844, %v2054
        %v2057 = vmul.f32 %v1839, %v2054
        %v2058 = vmul.f32 %v1846, %v2054
        %2062 = vrot.lane.b32.xlu0 %v2056, 96
        %v2063 = vpop.permute.xlu0 %2062
        %2064 = vrot.lane.b32.xlu0 %v2057, 96
        %v2065 = vpop.permute.xlu0 %2064
        %2066 = vrot.lane.b32.xlu0 %v2058, 96
        %v2067 = vpop.permute.xlu0 %2066
        %v2068 = vsel %vm607, %v2063, %v2065
        %v2069 = vsel %vm607, %v2065, %v2067
        %v2073 = vadd.f32 %v2046, %v2068
        %v2074 = vadd.f32 %v2047, %v2069
        %v2075 = vadd.f32 %v2048, %v2067
        %2079 = vrot.lane.b32.xlu0 %v2073, 14
        %v2080 = vpop.permute.xlu0 %2079
        %2081 = vrot.lane.b32.xlu0 %v2074, 14
        %v2082 = vpop.permute.xlu0 %2081
        %2083 = vrot.lane.b32.xlu0 %v2075, 14
        %v2084 = vpop.permute.xlu0 %2083
        %vm2085 = vcmask 113664
        %v2086 = vsel %vm2085, %v2080, %v2082
        %v2087 = vsel %vm2085, %v2082, %v2084
        %v2091 = vsel %vm1779, %v2080, 0.0
        %v2092 = vsel %vm1780, %v2086, 0.0
        %v2093 = vsel %vm1781, %v2087, 0.0
        %v2094 = vadd.f32 %v2006, %v2091
        %v2095 = vadd.f32 %v2007, %v2092
        %v2096 = vadd.f32 %v2008, %v2093
        %v2097 = vadd.f32 %v1794, %v2094
        %v2098 = vadd.f32 %v1795, %v2095
        %v2099 = vadd.f32 %v1796, %v2096
        %v2100 = vld [vmem:[%s4] sm:$0xff]
        %2102 = vset.pattern.permute.xlu0 0
        %2103 = vperm.xlu0 %2102, %v2100
        %v2104 = vpop.permute.xlu0 %2103
        %v2106 = vadd.f32 %v2097, %v2104
        %v2107 = vadd.f32 %v2098, %v2104
        %v2108 = vadd.f32 %v2099, %v2104
        %2112 = vrot.lane.b32.xlu0 %v2106, 112
        %v2113 = vpop.permute.xlu0 %2112
        %2114 = vrot.lane.b32.xlu0 %v2107, 112
        %v2115 = vpop.permute.xlu0 %2114
        %2116 = vrot.lane.b32.xlu0 %v2108, 112
        %v2117 = vpop.permute.xlu0 %2116
        %v2118 = vsel %vm294, %v2113, %v2115
        %v2119 = vsel %vm294, %v2115, %v2117
        %2122 = vst [vmem:[%s268] sm:$0xff] %v2118
        %2123 = vst [vmem:[%s268 + $0x8] sm:$0xff] %v2119
        %s2124 = sand.u32 %s175, 1
        %s2125 = scalar_lea.sflag [#allocation3], %s2124
        %s2126 = sand.u32 %s175, 1
        %s2127 = smul.addr %s2126, 16
        %s2128 = scalar_lea.vmem [#allocation2], %s2127
        // Predicated region
        $region45: #{tpu_custom_call.1} parent=43 // pred_check
          %p2129 = pneg %p185
        $region46: #{tpu_custom_call.1} parent=43 // pred_check_branch
          %2131 = sbr.rel (%p2129) target = $region48
        $region47: #{tpu_custom_call.1} parent=43 // pred_region
          %s2132 = smul.u32 2, %s25
          %s2134 = ssub.s32 256, 256
          %2135 = vsyncadd %s2125, %s2134
          %s2136 = smul.addr %s24, 2
          %s2137 = sadd.s32 %s2132, %s2136
          %s2138 = smul.addr %s2137, 128
          %s2139 = scalar_lea.hbm %s6, %s2138
          %s2141 = sshll.u32 %s2128, 4
          %s2142 = int_to_ptr.vmem [resolvable:$true] %s2141
          %2144 = dma.vmem_to_hbm [thread:$0]  %s2142, 256, %s2139, %s2125
        $region48: #{tpu_custom_call.1} parent=43 // pred_fallthru
          _
      $region44: #{tpu_custom_call.1} parent=5 // pred_fallthru
        _
      %p2145 = scmp.le.s32.totalorder 2, %s15
      // Predicated region
      $region49: #{tpu_custom_call.1} parent=5 // pred_check
        %p2146 = pneg %p2145
      $region50: #{tpu_custom_call.1} parent=5 // pred_check_branch
        %2148 = sbr.rel (%p2146) target = $region52
      $region51: #{tpu_custom_call.1} parent=5 // pred_region
        %s2149 = ssub.s32 %s15, 2
        // Predicated region
        $region53: #{tpu_custom_call.1} parent=51 // pred_check
          %p2150 = pneg %p191
        $region54: #{tpu_custom_call.1} parent=51 // pred_check_branch
          %2152 = sbr.rel (%p2150) target = $region56
        $region55: #{tpu_custom_call.1} parent=51 // pred_region
          %s2153 = sand.u32 %s176, 1
          %s2154 = scalar_lea.sflag [#allocation3], %s2153
          %s2155 = sand.u32 %s176, 1
          %s2156 = smul.addr %s2155, 16
          %s2157 = scalar_lea.vmem [#allocation2], %s2156
          %2158 = dma.done %s2154, 256
        $region56: #{tpu_custom_call.1} parent=51 // pred_fallthru
          _
      $region52: #{tpu_custom_call.1} parent=5 // pred_fallthru
        _
    $region6: #{tpu_custom_call.1} parent=1 // loop_footer
      %s19 = sadd.s32 1, %s15
    $region7: #{tpu_custom_call.1} parent=1 // loop_footer_branch
      %14 = sbr.rel target = $region3
    $region8: #{tpu_custom_call.1} parent=1 // loop_exit
      _
    %2159 = vsyncpa [#allocation3], 1
    %s2160 = scalar_lea.sflag [#allocation3], 1
    %2161 = vsyncpa %s2160, 1

</llo_original>
